<compile_context>
chip_gen: v6e
topology: v6e:2x2x1
jax: 0.10.0
libtpu: 0.0.40
codegen_flags: <defaults>
</compile_context>

<pallas_src>
import functools

import jax
import jax.numpy as jnp
from jax.experimental import pallas as pl
from jax.experimental.pallas import tpu as pltpu

LRELU_SLOPE = 0.1


def get_padding(kernel_size, dilation=1):
    return int((kernel_size * dilation - dilation) / 2)


def _resblock2_kernel(h_ref, x_ref, w1_ref, b1_ref, w2_ref, b2_ref, o_ref, *,
                      K, d1, d2, C, t_tile, t_valid, nb, pack, dot_dtype):
    """One (batch block, time tile) grid step: both convs fused.

    h_ref:  (nb, 1, C, 2H)  [left halo | right halo] strip of x for this tile
    x_ref:  (nb, C, t_tile) input tile
    wN_ref: (C, K*C)        conv N weight, taps packed along Cin (dot_dtype)
    bN_ref: (C, 1)          conv N bias (f32)
    o_ref:  (nb, C, t_tile) output tile
    """
    pad1 = (K // 2) * d1
    pad2 = (K // 2) * d2
    H = pad1 + pad2
    L1 = t_tile + 2 * pad2                       # width of intermediate window

    # Valid-range mask over the intermediate window: conv2 must see zero
    # padding outside the real sequence [0, t_valid) (kills conv1-bias leakage
    # and any padded-tail garbage).  (1, L1) row, broadcast on use.  Kept
    # unconditional: interior tiles pay one (C, L1) select, which is noise next
    # to the matmuls, and it avoids an scf.if over a large vector value.
    start = pl.program_id(1) * t_tile
    gpos = start - pad2 + jax.lax.broadcasted_iota(jnp.int32, (1, L1), 1)
    in_range = jnp.logical_and(gpos >= 0, gpos < t_valid)

    w1 = w1_ref[...]
    w2 = w2_ref[...]
    b1 = b1_ref[...]
    b2 = b2_ref[...]

    def conv(w, u, d, L):
        # u: (C, L + 2*(K//2)*d) activation window in dot_dtype; returns f32.
        if pack:
            # Small C: one fat MXU contraction (C, K*C) @ (K*C, L).
            rhs = jnp.concatenate([u[:, k * d:k * d + L] for k in range(K)], axis=0)
            return jnp.dot(w, rhs, preferred_element_type=jnp.float32)
        # Large C: K thin accumulated dots, no 3x activation copy in VMEM.
        y = jnp.zeros((C, L), jnp.float32)
        for k in range(K):
            y = y + jnp.dot(w[:, k * C:(k + 1) * C], u[:, k * d:k * d + L],
                            preferred_element_type=jnp.float32)
        return y

    for n in range(nb):
        lh = h_ref[n, 0, :, :H].astype(jnp.float32)
        rh = h_ref[n, 0, :, H:].astype(jnp.float32)
        xc = x_ref[n].astype(jnp.float32)
        # Halo-extended window (C, t_tile + 2H); halos are zero at sequence
        # edges so conv1's zero padding comes for free.
        win = jnp.concatenate([lh, xc, rh], axis=-1)

        # ---- layer 1: leaky_relu -> conv1d(dilation=d1) -> + residual -------
        u1 = jnp.where(win > 0, win, LRELU_SLOPE * win).astype(dot_dtype)
        x1 = conv(w1, u1, d1, L1) + b1 + win[:, pad1:pad1 + L1]
        x1 = jnp.where(in_range, x1, 0.0)

        # ---- layer 2: leaky_relu -> conv1d(dilation=d2) -> + residual -------
        u2 = jnp.where(x1 > 0, x1, LRELU_SLOPE * x1).astype(dot_dtype)
        out = conv(w2, u2, d2, t_tile) + b2 + x1[:, pad2:pad2 + t_tile]

        o_ref[n] = out.astype(o_ref.dtype)


def _choose_t_tile(C):
    """Per-generation / per-channel time-tile default (multiple of 128)."""
    if C <= 64:
        return 2048
    if C <= 256:
        return 1024
    tt = 512                    # v7x-safe default at large C (64 MiB VMEM)
    try:
        kind = jax.devices()[0].device_kind.lower()
        if ("v5" in kind) or ("v6" in kind):
            tt = 1024           # 128 MiB VMEM generations can take wider tiles
    except Exception:
        pass
    return tt


def resblock2_forward(x, w1, b1, w2, b2, dilations=(1, 3), *, t_tile=None,
                      use_bf16_matmul=True, pack_taps=None,
                      single_buffer_weights=True, interpret=False):
    """x: (B, C, T); wN: (C, C, K) PyTorch layout; bN: (C,)."""
    B, C, T = x.shape
    K = int(w1.shape[-1])
    assert K % 2 == 1, "kernel assumes odd kernel_size (symmetric 'same' padding)"
    d1, d2 = (int(d) for d in dilations)
    pad1 = (K // 2) * d1
    pad2 = (K // 2) * d2
    H = pad1 + pad2                              # halo needed to fuse both convs

    # ---- time tiling ---------------------------------------------------------
    if t_tile is None:
        t_tile = _choose_t_tile(C)
    if T > t_tile:
        t_tile = max(128, (t_tile // 128) * 128)  # lane-aligned tiles when tiling
    tt = T if T <= t_tile else t_tile

    # ---- fold batch rows for small-C stages (amortize per-step overhead) -----
    nb = 1
    if C <= 64:
        for cand in (4, 2):
            if B % cand == 0:
                nb = cand
                break

    nt = -(-T // tt)
    # v7x has 2 TensorCores: make sure there are >= 2 parallel grid steps.
    if (B // nb) * nt < 2:
        if nb > 1:
            nb = 1
        if B * nt < 2 and T > 128:
            tt = 128 * ((-(-T // 128) + 1) // 2)
            nt = -(-T // tt)
    nt = int(nt)
    assert nt == 1 or tt >= H, "time tile must cover the conv halo"

    T_round = nt * tt
    xp = x if T_round == T else jnp.pad(x, ((0, 0), (0, 0), (0, T_round - T)))

    # ---- one (C, 2H) halo strip per (batch, tile): [left | right] ------------
    if nt == 1:
        halos = jnp.zeros((B, 1, C, 2 * H), x.dtype)
    else:
        xeH = jnp.pad(xp, ((0, 0), (0, 0), (H, H)))            # (B, C, T_round+2H)
        lh = xeH[:, :, :T_round].reshape(B, C, nt, tt)[:, :, :, :H]
        rh = xeH[:, :, tt + H:]
        rh = jnp.pad(rh, ((0, 0), (0, 0), (0, T_round - rh.shape[-1])))
        rh = rh.reshape(B, C, nt, tt)[:, :, :, :H]
        halos = jnp.concatenate([lh, rh], axis=-1)             # (B, C, nt, 2H)
        halos = jnp.transpose(halos, (0, 2, 1, 3))             # (B, nt, C, 2H)

    # ---- weights: taps packed along Cin, optionally pre-cast to bf16 ---------
    dot_dtype = jnp.bfloat16 if use_bf16_matmul else jnp.float32
    if pack_taps is None:
        pack_taps = C < 128
    w1p = jnp.transpose(w1, (0, 2, 1)).reshape(C, K * C).astype(dot_dtype)
    w2p = jnp.transpose(w2, (0, 2, 1)).reshape(C, K * C).astype(dot_dtype)
    b1_2d = b1.reshape(C, 1).astype(jnp.float32)
    b2_2d = b2.reshape(C, 1).astype(jnp.float32)

    kernel = functools.partial(
        _resblock2_kernel, K=K, d1=d1, d2=d2, C=C, t_tile=tt, t_valid=int(T),
        nb=nb, pack=bool(pack_taps), dot_dtype=dot_dtype)

    grid = (B // nb, nt)

    def _call(single_buffer):
        wkw = dict(pipeline_mode=pl.Buffered(buffer_count=1)) if single_buffer else {}
        in_specs = [
            pl.BlockSpec((nb, 1, C, 2 * H), lambda b, i: (b, i, 0, 0)),   # halos
            pl.BlockSpec((nb, C, tt), lambda b, i: (b, 0, i)),            # x tile
            pl.BlockSpec((C, K * C), lambda b, i: (0, 0), **wkw),         # w1 packed
            pl.BlockSpec((C, 1), lambda b, i: (0, 0), **wkw),             # b1
            pl.BlockSpec((C, K * C), lambda b, i: (0, 0), **wkw),         # w2 packed
            pl.BlockSpec((C, 1), lambda b, i: (0, 0), **wkw),             # b2
        ]
        out_specs = pl.BlockSpec((nb, C, tt), lambda b, i: (b, 0, i))
        return pl.pallas_call(
            kernel,
            out_shape=jax.ShapeDtypeStruct((B, C, T_round), x.dtype),
            grid=grid,
            in_specs=in_specs,
            out_specs=out_specs,
            compiler_params=pltpu.CompilerParams(
                dimension_semantics=("parallel", "parallel"),
                vmem_limit_bytes=64 * 1024 * 1024),
            interpret=interpret,
        )(halos, xp, w1p, b1_2d, w2p, b2_2d)

    if single_buffer_weights:
        try:
            out = _call(True)
        except Exception:       # pipeline_mode / Buffered(1) unsupported -> default buffering
            out = _call(False)
    else:
        out = _call(False)

    return out if T_round == T else out[:, :, :T]


def resblock2_reference(x, w1, b1, w2, b2, dilations=(1, 3)):
    """Pure-JAX reference (lax.conv_general_dilated) matching the PyTorch module."""
    def conv(xt, w, b, d):
        pad = get_padding(w.shape[-1], d)
        y = jax.lax.conv_general_dilated(
            xt, w, window_strides=(1,), padding=[(pad, pad)],
            rhs_dilation=(d,), dimension_numbers=("NCH", "OIH", "NCH"))
        return y + b[None, :, None]

    for (w, b, d) in ((w1, b1, dilations[0]), (w2, b2, dilations[1])):
        xt = jnp.where(x > 0, x, LRELU_SLOPE * x)
        x = conv(xt, w, b, d) + x
    return x


if __name__ == "__main__":
    dilations = (1, 3)
    K = 3
    key = jax.random.PRNGKey(0)

    def make_params(k, C):
        k1, k2 = jax.random.split(k)
        # init_weights: normal(mean=0.0, std=0.01); deterministic small biases.
        w1 = 0.01 * jax.random.normal(k1, (C, C, K), jnp.float32)
        w2 = 0.01 * jax.random.normal(k2, (C, C, K), jnp.float32)
        b1 = jnp.linspace(-0.05, 0.05, C, dtype=jnp.float32)
        b2 = jnp.linspace(0.05, -0.05, C, dtype=jnp.float32)
        return w1, b1, w2, b2

    # 1) Small single-tile case (spec shapes), exact f32 matmuls, packed taps.
    kp, kx, key = jax.random.split(key, 3)
    B, C, T = 2, 4, 16
    w1, b1, w2, b2 = make_params(kp, C)
    x = jax.random.normal(kx, (B, C, T), jnp.float32)
    out = jax.block_until_ready(
        resblock2_forward(x, w1, b1, w2, b2, dilations, use_bf16_matmul=False))
    ref = resblock2_reference(x, w1, b1, w2, b2, dilations)
    assert out.shape == (B, C, T)
    assert jnp.allclose(out, ref, atol=1e-5, rtol=1e-5), "case 1 (f32, single tile) mismatch"

    # 2) Multi-tile + ragged T + batch folding + unpacked-taps path + bf16 dots.
    kp, kx, key = jax.random.split(key, 3)
    B, C, T = 2, 8, 700
    w1, b1, w2, b2 = make_params(kp, C)
    x = jax.random.normal(kx, (B, C, T), jnp.float32)
    out = jax.block_until_ready(
        resblock2_forward(x, w1, b1, w2, b2, dilations, t_tile=256, pack_taps=False))
    ref = resblock2_reference(x, w1, b1, w2, b2, dilations)
    assert out.shape == (B, C, T)
    assert jnp.allclose(out, ref, atol=3e-3, rtol=3e-3), "case 2 (multi-tile, bf16) mismatch"

    # 3) B == 1: auto time-split keeps >= 2 parallel steps (v7x); packed + bf16.
    kp, kx, key = jax.random.split(key, 3)
    B, C, T = 1, 4, 300
    w1, b1, w2, b2 = make_params(kp, C)
    x = jax.random.normal(kx, (B, C, T), jnp.float32)
    out = jax.block_until_ready(resblock2_forward(x, w1, b1, w2, b2, dilations))
    ref = resblock2_reference(x, w1, b1, w2, b2, dilations)
    assert out.shape == (B, C, T)
    assert jnp.allclose(out, ref, atol=3e-3, rtol=3e-3), "case 3 (auto time-split) mismatch"

    print("KERNEL_OK")
</pallas_src>

<mosaic_0001>
module attributes {stable_mosaic.version = 11 : i64} {
  func.func @_resblock2_kernel(%arg0: i32, %arg1: i32, %arg2: memref<1x1x4x8xf32, #tpu.memory_space<vmem>>, %arg3: memref<1x4x16xf32, #tpu.memory_space<vmem>>, %arg4: memref<4x12xf32, #tpu.memory_space<vmem>>, %arg5: memref<4x1xf32, #tpu.memory_space<vmem>>, %arg6: memref<4x12xf32, #tpu.memory_space<vmem>>, %arg7: memref<4x1xf32, #tpu.memory_space<vmem>>, %arg8: memref<1x4x16xf32, #tpu.memory_space<vmem>>) attributes {dimension_semantics = [#tpu.dimension_semantics<parallel>, #tpu.dimension_semantics<parallel>], iteration_bounds = array<i64: 2, 1>, scalar_prefetch = 0 : i64, scratch_operands = 0 : i64, tpu.core_type = #tpu.core_type<tc>, window_params = [{transform_indices = @transform_0, window_bounds = array<i64: 1, 1, 4, 8>}, {transform_indices = @transform_1, window_bounds = array<i64: 1, 4, 16>}, {pipeline_mode = #tpu.pipeline_mode<synchronous>, transform_indices = @transform_2, window_bounds = array<i64: 4, 12>}, {pipeline_mode = #tpu.pipeline_mode<synchronous>, transform_indices = @transform_3, window_bounds = array<i64: 4, 1>}, {pipeline_mode = #tpu.pipeline_mode<synchronous>, transform_indices = @transform_4, window_bounds = array<i64: 4, 12>}, {pipeline_mode = #tpu.pipeline_mode<synchronous>, transform_indices = @transform_5, window_bounds = array<i64: 4, 1>}, {transform_indices = @transform_6, window_bounds = array<i64: 1, 4, 16>}]} {
    %c16_i32 = arith.constant 16 : i32
    %0 = arith.muli %arg1, %c16_i32 : i32
    %c3_i32 = arith.constant 3 : i32
    %1 = arith.subi %0, %c3_i32 : i32
    %2 = tpu.iota {dimensions = array<i32: 1>} : vector<1x22xi32>
    %3 = vector.broadcast %1 : i32 to vector<1x22xi32>
    %4 = arith.addi %3, %2 : vector<1x22xi32>
    %c0_i32 = arith.constant 0 : i32
    %5 = vector.broadcast %c0_i32 : i32 to vector<1x22xi32>
    %6 = arith.cmpi sge, %4, %5 : vector<1x22xi32>
    %c16_i32_0 = arith.constant 16 : i32
    %7 = vector.broadcast %c16_i32_0 : i32 to vector<1x22xi32>
    %8 = arith.cmpi slt, %4, %7 : vector<1x22xi32>
    %9 = arith.andi %6, %8 : vector<1x22xi1>
    %c0 = arith.constant 0 : index
    %c0_1 = arith.constant 0 : index
    %10 = vector.load %arg4[%c0, %c0_1] : memref<4x12xf32, #tpu.memory_space<vmem>>, vector<4x12xf32>
    %c0_2 = arith.constant 0 : index
    %c0_3 = arith.constant 0 : index
    %11 = vector.load %arg6[%c0_2, %c0_3] : memref<4x12xf32, #tpu.memory_space<vmem>>, vector<4x12xf32>
    %c0_4 = arith.constant 0 : index
    %c0_5 = arith.constant 0 : index
    %12 = vector.load %arg5[%c0_4, %c0_5] : memref<4x1xf32, #tpu.memory_space<vmem>>, vector<4x1xf32>
    %c0_6 = arith.constant 0 : index
    %c0_7 = arith.constant 0 : index
    %13 = vector.load %arg7[%c0_6, %c0_7] : memref<4x1xf32, #tpu.memory_space<vmem>>, vector<4x1xf32>
    %c0_8 = arith.constant 0 : index
    %c0_9 = arith.constant 0 : index
    %c0_10 = arith.constant 0 : index
    %c0_11 = arith.constant 0 : index
    %14 = vector.load %arg2[%c0_8, %c0_9, %c0_10, %c0_11] : memref<1x1x4x8xf32, #tpu.memory_space<vmem>>, vector<1x1x4x4xf32>
    %15 = vector.shape_cast %14 : vector<1x1x4x4xf32> to vector<4x4xf32>
    %c0_12 = arith.constant 0 : index
    %c0_13 = arith.constant 0 : index
    %c0_14 = arith.constant 0 : index
    %c4 = arith.constant 4 : index
    %16 = vector.load %arg2[%c0_12, %c0_13, %c0_14, %c4] : memref<1x1x4x8xf32, #tpu.memory_space<vmem>>, vector<1x1x4x4xf32>
    %17 = vector.shape_cast %16 : vector<1x1x4x4xf32> to vector<4x4xf32>
    %c0_15 = arith.constant 0 : index
    %c0_16 = arith.constant 0 : index
    %c0_17 = arith.constant 0 : index
    %18 = vector.load %arg3[%c0_15, %c0_16, %c0_17] : memref<1x4x16xf32, #tpu.memory_space<vmem>>, vector<1x4x16xf32>
    %19 = vector.shape_cast %18 : vector<1x4x16xf32> to vector<4x16xf32>
    %20 = tpu.concatenate %15, %19, %17 in 1 : vector<4x4xf32>, vector<4x16xf32>, vector<4x4xf32> -> vector<4x24xf32>
    %cst = arith.constant 0.000000e+00 : f32
    %21 = vector.broadcast %cst : f32 to vector<4x24xf32>
    %22 = arith.cmpf ogt, %20, %21 : vector<4x24xf32>
    %cst_18 = arith.constant 1.000000e-01 : f32
    %23 = vector.broadcast %cst_18 : f32 to vector<4x24xf32>
    %24 = arith.mulf %23, %20 : vector<4x24xf32>
    %25 = arith.select %22, %20, %24 : vector<4x24xi1>, vector<4x24xf32>
    %26 = vector.extract_strided_slice %25 {offsets = [0, 0], sizes = [4, 22], strides = [1, 1]} : vector<4x24xf32> to vector<4x22xf32>
    %27 = vector.extract_strided_slice %25 {offsets = [0, 1], sizes = [4, 22], strides = [1, 1]} : vector<4x24xf32> to vector<4x22xf32>
    %28 = vector.extract_strided_slice %25 {offsets = [0, 2], sizes = [4, 22], strides = [1, 1]} : vector<4x24xf32> to vector<4x22xf32>
    %29 = tpu.concatenate %26, %27, %28 in 0 : vector<4x22xf32>, vector<4x22xf32>, vector<4x22xf32> -> vector<12x22xf32>
    %cst_19 = arith.constant dense<0.000000e+00> : vector<4x22xf32>
    %30 = tpu.matmul %10, %29, %cst_19 {dimension_numbers = #tpu.dot_dimension_numbers<[1], [0], [0], [1], [0, 0, 1, 1], [], []>} : vector<4x12xf32>, vector<12x22xf32>, vector<4x22xf32> -> vector<4x22xf32>
    %31 = vector.broadcast %12 : vector<4x1xf32> to vector<4x22xf32>
    %32 = arith.addf %30, %31 : vector<4x22xf32>
    %33 = vector.extract_strided_slice %20 {offsets = [0, 1], sizes = [4, 22], strides = [1, 1]} : vector<4x24xf32> to vector<4x22xf32>
    %34 = arith.addf %32, %33 : vector<4x22xf32>
    %cst_20 = arith.constant 0.000000e+00 : f32
    %35 = vector.shape_cast %9 : vector<1x22xi1> to vector<1x22xi1>
    %36 = vector.broadcast %35 : vector<1x22xi1> to vector<4x22xi1>
    %37 = vector.broadcast %cst_20 : f32 to vector<4x22xf32>
    %38 = arith.select %36, %34, %37 : vector<4x22xi1>, vector<4x22xf32>
    %cst_21 = arith.constant 0.000000e+00 : f32
    %39 = vector.broadcast %cst_21 : f32 to vector<4x22xf32>
    %40 = arith.cmpf ogt, %38, %39 : vector<4x22xf32>
    %cst_22 = arith.constant 1.000000e-01 : f32
    %41 = vector.broadcast %cst_22 : f32 to vector<4x22xf32>
    %42 = arith.mulf %41, %38 : vector<4x22xf32>
    %43 = arith.select %40, %38, %42 : vector<4x22xi1>, vector<4x22xf32>
    %44 = vector.extract_strided_slice %43 {offsets = [0, 0], sizes = [4, 16], strides = [1, 1]} : vector<4x22xf32> to vector<4x16xf32>
    %45 = vector.extract_strided_slice %43 {offsets = [0, 3], sizes = [4, 16], strides = [1, 1]} : vector<4x22xf32> to vector<4x16xf32>
    %46 = vector.extract_strided_slice %43 {offsets = [0, 6], sizes = [4, 16], strides = [1, 1]} : vector<4x22xf32> to vector<4x16xf32>
    %47 = tpu.concatenate %44, %45, %46 in 0 : vector<4x16xf32>, vector<4x16xf32>, vector<4x16xf32> -> vector<12x16xf32>
    %cst_23 = arith.constant dense<0.000000e+00> : vector<4x16xf32>
    %48 = tpu.matmul %11, %47, %cst_23 {dimension_numbers = #tpu.dot_dimension_numbers<[1], [0], [0], [1], [0, 0, 1, 1], [], []>} : vector<4x12xf32>, vector<12x16xf32>, vector<4x16xf32> -> vector<4x16xf32>
    %49 = vector.broadcast %13 : vector<4x1xf32> to vector<4x16xf32>
    %50 = arith.addf %48, %49 : vector<4x16xf32>
    %51 = vector.extract_strided_slice %38 {offsets = [0, 3], sizes = [4, 16], strides = [1, 1]} : vector<4x22xf32> to vector<4x16xf32>
    %52 = arith.addf %50, %51 : vector<4x16xf32>
    %c0_24 = arith.constant 0 : index
    %c0_25 = arith.constant 0 : index
    %c0_26 = arith.constant 0 : index
    %53 = vector.load %arg8[%c0_24, %c0_25, %c0_26] : memref<1x4x16xf32, #tpu.memory_space<vmem>>, vector<1x4x16xf32>
    %54 = vector.shape_cast %53 : vector<1x4x16xf32> to vector<4x16xf32>
    %55 = vector.shape_cast %52 : vector<4x16xf32> to vector<1x4x16xf32>
    tpu.vector_store %arg8[%c0_24, %c0_25, %c0_26], %55 {strides = array<i32>} : memref<1x4x16xf32, #tpu.memory_space<vmem>>, vector<1x4x16xf32>,
    return
  }
  func.func @transform_0(%arg0: i32, %arg1: i32) -> (i32, i32, i32, i32) {
    %c0_i32 = arith.constant 0 : i32
    %c0_i32_0 = arith.constant 0 : i32
    %c0_i32_1 = arith.constant 0 : i32
    return %arg0, %arg1, %c0_i32, %c0_i32_0 : i32, i32, i32, i32
  }
  func.func @transform_1(%arg0: i32, %arg1: i32) -> (i32, i32, i32) {
    %c0_i32 = arith.constant 0 : i32
    %c0_i32_0 = arith.constant 0 : i32
    return %arg0, %c0_i32, %arg1 : i32, i32, i32
  }
  func.func @transform_2(%arg0: i32, %arg1: i32) -> (i32, i32) {
    %c0_i32 = arith.constant 0 : i32
    %c0_i32_0 = arith.constant 0 : i32
    %c0_i32_1 = arith.constant 0 : i32
    return %c0_i32, %c0_i32_0 : i32, i32
  }
  func.func @transform_3(%arg0: i32, %arg1: i32) -> (i32, i32) {
    %c0_i32 = arith.constant 0 : i32
    %c0_i32_0 = arith.constant 0 : i32
    %c0_i32_1 = arith.constant 0 : i32
    return %c0_i32, %c0_i32_0 : i32, i32
  }
  func.func @transform_4(%arg0: i32, %arg1: i32) -> (i32, i32) {
    %c0_i32 = arith.constant 0 : i32
    %c0_i32_0 = arith.constant 0 : i32
    %c0_i32_1 = arith.constant 0 : i32
    return %c0_i32, %c0_i32_0 : i32, i32
  }
  func.func @transform_5(%arg0: i32, %arg1: i32) -> (i32, i32) {
    %c0_i32 = arith.constant 0 : i32
    %c0_i32_0 = arith.constant 0 : i32
    %c0_i32_1 = arith.constant 0 : i32
    return %c0_i32, %c0_i32_0 : i32, i32
  }
  func.func @transform_6(%arg0: i32, %arg1: i32) -> (i32, i32, i32) {
    %c0_i32 = arith.constant 0 : i32
    %c0_i32_0 = arith.constant 0 : i32
    return %arg0, %c0_i32, %arg1 : i32, i32, i32
  }
}

module attributes {stable_mosaic.version = 11 : i64} {
  func.func @_resblock2_kernel(%arg0: i32, %arg1: i32, %arg2: memref<1x1x4x8xf32, #tpu.memory_space<vmem>>, %arg3: memref<1x4x16xf32, #tpu.memory_space<vmem>>, %arg4: memref<4x12xf32, #tpu.memory_space<vmem>>, %arg5: memref<4x1xf32, #tpu.memory_space<vmem>>, %arg6: memref<4x12xf32, #tpu.memory_space<vmem>>, %arg7: memref<4x1xf32, #tpu.memory_space<vmem>>, %arg8: memref<1x4x16xf32, #tpu.memory_space<vmem>>) attributes {dimension_semantics = [#tpu.dimension_semantics<parallel>, #tpu.dimension_semantics<parallel>], iteration_bounds = array<i64: 2, 1>, scalar_prefetch = 0 : i64, scratch_operands = 0 : i64, tpu.core_type = #tpu.core_type<tc>, window_params = [{transform_indices = @transform_0, window_bounds = array<i64: 1, 1, 4, 8>}, {transform_indices = @transform_1, window_bounds = array<i64: 1, 4, 16>}, {pipeline_mode = #tpu.pipeline_mode<synchronous>, transform_indices = @transform_2, window_bounds = array<i64: 4, 12>}, {pipeline_mode = #tpu.pipeline_mode<synchronous>, transform_indices = @transform_3, window_bounds = array<i64: 4, 1>}, {pipeline_mode = #tpu.pipeline_mode<synchronous>, transform_indices = @transform_4, window_bounds = array<i64: 4, 12>}, {pipeline_mode = #tpu.pipeline_mode<synchronous>, transform_indices = @transform_5, window_bounds = array<i64: 4, 1>}, {transform_indices = @transform_6, window_bounds = array<i64: 1, 4, 16>}]} {
    %c16_i32 = arith.constant 16 : i32
    %0 = arith.muli %arg1, %c16_i32 : i32
    %c3_i32 = arith.constant 3 : i32
    %1 = arith.subi %0, %c3_i32 : i32
    %2 = tpu.iota {dimensions = array<i32: 1>} : vector<1x22xi32>
    %3 = vector.broadcast %1 : i32 to vector<1x22xi32>
    %4 = arith.addi %3, %2 : vector<1x22xi32>
    %c0_i32 = arith.constant 0 : i32
    %5 = vector.broadcast %c0_i32 : i32 to vector<1x22xi32>
    %6 = arith.cmpi sge, %4, %5 : vector<1x22xi32>
    %c16_i32_0 = arith.constant 16 : i32
    %7 = vector.broadcast %c16_i32_0 : i32 to vector<1x22xi32>
    %8 = arith.cmpi slt, %4, %7 : vector<1x22xi32>
    %9 = arith.andi %6, %8 : vector<1x22xi1>
    %c0 = arith.constant 0 : index
    %c0_1 = arith.constant 0 : index
    %10 = vector.load %arg4[%c0, %c0_1] : memref<4x12xf32, #tpu.memory_space<vmem>>, vector<4x12xf32>
    %c0_2 = arith.constant 0 : index
    %c0_3 = arith.constant 0 : index
    %11 = vector.load %arg6[%c0_2, %c0_3] : memref<4x12xf32, #tpu.memory_space<vmem>>, vector<4x12xf32>
    %c0_4 = arith.constant 0 : index
    %c0_5 = arith.constant 0 : index
    %12 = vector.load %arg5[%c0_4, %c0_5] : memref<4x1xf32, #tpu.memory_space<vmem>>, vector<4x1xf32>
    %c0_6 = arith.constant 0 : index
    %c0_7 = arith.constant 0 : index
    %13 = vector.load %arg7[%c0_6, %c0_7] : memref<4x1xf32, #tpu.memory_space<vmem>>, vector<4x1xf32>
    %c0_8 = arith.constant 0 : index
    %c0_9 = arith.constant 0 : index
    %c0_10 = arith.constant 0 : index
    %c0_11 = arith.constant 0 : index
    %14 = vector.load %arg2[%c0_8, %c0_9, %c0_10, %c0_11] : memref<1x1x4x8xf32, #tpu.memory_space<vmem>>, vector<1x1x4x4xf32>
    %15 = vector.shape_cast %14 : vector<1x1x4x4xf32> to vector<4x4xf32>
    %c0_12 = arith.constant 0 : index
    %c0_13 = arith.constant 0 : index
    %c0_14 = arith.constant 0 : index
    %c4 = arith.constant 4 : index
    %16 = vector.load %arg2[%c0_12, %c0_13, %c0_14, %c4] : memref<1x1x4x8xf32, #tpu.memory_space<vmem>>, vector<1x1x4x4xf32>
    %17 = vector.shape_cast %16 : vector<1x1x4x4xf32> to vector<4x4xf32>
    %c0_15 = arith.constant 0 : index
    %c0_16 = arith.constant 0 : index
    %c0_17 = arith.constant 0 : index
    %18 = vector.load %arg3[%c0_15, %c0_16, %c0_17] : memref<1x4x16xf32, #tpu.memory_space<vmem>>, vector<1x4x16xf32>
    %19 = vector.shape_cast %18 : vector<1x4x16xf32> to vector<4x16xf32>
    %20 = tpu.concatenate %15, %19, %17 in 1 : vector<4x4xf32>, vector<4x16xf32>, vector<4x4xf32> -> vector<4x24xf32>
    %cst = arith.constant 0.000000e+00 : f32
    %21 = vector.broadcast %cst : f32 to vector<4x24xf32>
    %22 = arith.cmpf ogt, %20, %21 : vector<4x24xf32>
    %cst_18 = arith.constant 1.000000e-01 : f32
    %23 = vector.broadcast %cst_18 : f32 to vector<4x24xf32>
    %24 = arith.mulf %23, %20 : vector<4x24xf32>
    %25 = arith.select %22, %20, %24 : vector<4x24xi1>, vector<4x24xf32>
    %26 = vector.extract_strided_slice %25 {offsets = [0, 0], sizes = [4, 22], strides = [1, 1]} : vector<4x24xf32> to vector<4x22xf32>
    %27 = vector.extract_strided_slice %25 {offsets = [0, 1], sizes = [4, 22], strides = [1, 1]} : vector<4x24xf32> to vector<4x22xf32>
    %28 = vector.extract_strided_slice %25 {offsets = [0, 2], sizes = [4, 22], strides = [1, 1]} : vector<4x24xf32> to vector<4x22xf32>
    %29 = tpu.concatenate %26, %27, %28 in 0 : vector<4x22xf32>, vector<4x22xf32>, vector<4x22xf32> -> vector<12x22xf32>
    %cst_19 = arith.constant dense<0.000000e+00> : vector<4x22xf32>
    %30 = tpu.matmul %10, %29, %cst_19 {dimension_numbers = #tpu.dot_dimension_numbers<[1], [0], [0], [1], [0, 0, 1, 1], [], []>} : vector<4x12xf32>, vector<12x22xf32>, vector<4x22xf32> -> vector<4x22xf32>
    %31 = vector.broadcast %12 : vector<4x1xf32> to vector<4x22xf32>
    %32 = arith.addf %30, %31 : vector<4x22xf32>
    %33 = vector.extract_strided_slice %20 {offsets = [0, 1], sizes = [4, 22], strides = [1, 1]} : vector<4x24xf32> to vector<4x22xf32>
    %34 = arith.addf %32, %33 : vector<4x22xf32>
    %cst_20 = arith.constant 0.000000e+00 : f32
    %35 = vector.shape_cast %9 : vector<1x22xi1> to vector<1x22xi1>
    %36 = vector.broadcast %35 : vector<1x22xi1> to vector<4x22xi1>
    %37 = vector.broadcast %cst_20 : f32 to vector<4x22xf32>
    %38 = arith.select %36, %34, %37 : vector<4x22xi1>, vector<4x22xf32>
    %cst_21 = arith.constant 0.000000e+00 : f32
    %39 = vector.broadcast %cst_21 : f32 to vector<4x22xf32>
    %40 = arith.cmpf ogt, %38, %39 : vector<4x22xf32>
    %cst_22 = arith.constant 1.000000e-01 : f32
    %41 = vector.broadcast %cst_22 : f32 to vector<4x22xf32>
    %42 = arith.mulf %41, %38 : vector<4x22xf32>
    %43 = arith.select %40, %38, %42 : vector<4x22xi1>, vector<4x22xf32>
    %44 = vector.extract_strided_slice %43 {offsets = [0, 0], sizes = [4, 16], strides = [1, 1]} : vector<4x22xf32> to vector<4x16xf32>
    %45 = vector.extract_strided_slice %43 {offsets = [0, 3], sizes = [4, 16], strides = [1, 1]} : vector<4x22xf32> to vector<4x16xf32>
    %46 = vector.extract_strided_slice %43 {offsets = [0, 6], sizes = [4, 16], strides = [1, 1]} : vector<4x22xf32> to vector<4x16xf32>
    %47 = tpu.concatenate %44, %45, %46 in 0 : vector<4x16xf32>, vector<4x16xf32>, vector<4x16xf32> -> vector<12x16xf32>
    %cst_23 = arith.constant dense<0.000000e+00> : vector<4x16xf32>
    %48 = tpu.matmul %11, %47, %cst_23 {dimension_numbers = #tpu.dot_dimension_numbers<[1], [0], [0], [1], [0, 0, 1, 1], [], []>} : vector<4x12xf32>, vector<12x16xf32>, vector<4x16xf32> -> vector<4x16xf32>
    %49 = vector.broadcast %13 : vector<4x1xf32> to vector<4x16xf32>
    %50 = arith.addf %48, %49 : vector<4x16xf32>
    %51 = vector.extract_strided_slice %38 {offsets = [0, 3], sizes = [4, 16], strides = [1, 1]} : vector<4x22xf32> to vector<4x16xf32>
    %52 = arith.addf %50, %51 : vector<4x16xf32>
    %c0_24 = arith.constant 0 : index
    %c0_25 = arith.constant 0 : index
    %c0_26 = arith.constant 0 : index
    %53 = vector.load %arg8[%c0_24, %c0_25, %c0_26] : memref<1x4x16xf32, #tpu.memory_space<vmem>>, vector<1x4x16xf32>
    %54 = vector.shape_cast %53 : vector<1x4x16xf32> to vector<4x16xf32>
    %55 = vector.shape_cast %52 : vector<4x16xf32> to vector<1x4x16xf32>
    tpu.vector_store %arg8[%c0_24, %c0_25, %c0_26], %55 {strides = array<i32>} : memref<1x4x16xf32, #tpu.memory_space<vmem>>, vector<1x4x16xf32>,
    return
  }
  func.func @transform_0(%arg0: i32, %arg1: i32) -> (i32, i32, i32, i32) {
    %c0_i32 = arith.constant 0 : i32
    %c0_i32_0 = arith.constant 0 : i32
    %c0_i32_1 = arith.constant 0 : i32
    return %arg0, %arg1, %c0_i32, %c0_i32_0 : i32, i32, i32, i32
  }
  func.func @transform_1(%arg0: i32, %arg1: i32) -> (i32, i32, i32) {
    %c0_i32 = arith.constant 0 : i32
    %c0_i32_0 = arith.constant 0 : i32
    return %arg0, %c0_i32, %arg1 : i32, i32, i32
  }
  func.func @transform_2(%arg0: i32, %arg1: i32) -> (i32, i32) {
    %c0_i32 = arith.constant 0 : i32
    %c0_i32_0 = arith.constant 0 : i32
    %c0_i32_1 = arith.constant 0 : i32
    return %c0_i32, %c0_i32_0 : i32, i32
  }
  func.func @transform_3(%arg0: i32, %arg1: i32) -> (i32, i32) {
    %c0_i32 = arith.constant 0 : i32
    %c0_i32_0 = arith.constant 0 : i32
    %c0_i32_1 = arith.constant 0 : i32
    return %c0_i32, %c0_i32_0 : i32, i32
  }
  func.func @transform_4(%arg0: i32, %arg1: i32) -> (i32, i32) {
    %c0_i32 = arith.constant 0 : i32
    %c0_i32_0 = arith.constant 0 : i32
    %c0_i32_1 = arith.constant 0 : i32
    return %c0_i32, %c0_i32_0 : i32, i32
  }
  func.func @transform_5(%arg0: i32, %arg1: i32) -> (i32, i32) {
    %c0_i32 = arith.constant 0 : i32
    %c0_i32_0 = arith.constant 0 : i32
    %c0_i32_1 = arith.constant 0 : i32
    return %c0_i32, %c0_i32_0 : i32, i32
  }
  func.func @transform_6(%arg0: i32, %arg1: i32) -> (i32, i32, i32) {
    %c0_i32 = arith.constant 0 : i32
    %c0_i32_0 = arith.constant 0 : i32
    return %arg0, %c0_i32, %arg1 : i32, i32, i32
  }
}

</mosaic_0001>

<llo_original>
// kernel: tpu_custom_call.1
$region0: #{tpu_custom_call.1}
  #allocation0 [shape = 'u32[]', space=smem, size = 0x4, offset = 0x4, fixed_abs, tag = 'smem constant byte address 0x4 - core index']
  #allocation1 [shape = 'u32[144,128]{1,0:T(1,128)}', space=vmem, size = 0x12000, scoped, tag = 'internal scratch']
  %s0 = inlined_call_operand.vmem [shape: f32[2,1,4,8], index: 0, kind: input, shape index: {}]
  %s1 = inlined_call_operand.hbm [shape: f32[2,4,16], index: 1, kind: input, shape index: {}]
  %s2 = inlined_call_operand.vmem [shape: f32[4,12], index: 2, kind: input, shape index: {}]
  %s3 = inlined_call_operand.vmem [shape: f32[4,1], index: 3, kind: input, shape index: {}]
  %s4 = inlined_call_operand.vmem [shape: f32[4,12], index: 4, kind: input, shape index: {}]
  %s5 = inlined_call_operand.vmem [shape: f32[4,1], index: 5, kind: input, shape index: {}]
  %s6 = inlined_call_operand.hbm [shape: f32[2,4,16], index: 6, kind: output, shape index: {}]
  %s7 = sld [smem:[#allocation0]]
  $region61: #{tpu_custom_call.1} parent=0
    _
  %s9 = ssub.s32 1, %s7
  %s10 = scalar_select 0, %s9, %s7
  $region1: #{tpu_custom_call.1} parent=0
    #allocation2 [shape = 'u8[4096]{0}', space=vmem, size = 0x1000, scoped, tag = 'input window, operand 1']
    #allocation3 [shape = 's32[2]{0}', space=sflag, size = 0x8, scoped, tag = 'scoped memory for tpu_custom_call.1']
    #allocation4 [shape = 's32[2]{0}', space=sflag, size = 0x8, scoped, tag = 'scoped memory for tpu_custom_call.1']
    #allocation5 [shape = 'u8[4096]{0}', space=vmem, size = 0x1000, scoped, tag = 'output window, operand 0']
    %11 = vsyncpa [#allocation3], 0
    %s12 = scalar_lea.sflag [#allocation3], 1
    %13 = vsyncpa %s12, 0
    %14 = vsyncpa [#allocation4], 0
    %s15 = scalar_lea.sflag [#allocation4], 1
    %16 = vsyncpa %s15, 0
    loop: start=0, step=1, limit=4
    $region2: #{tpu_custom_call.1} parent=1 // loop_pre_header
      _
    $region3: #{tpu_custom_call.1} parent=1 // loop_header
      %s18 = sphi 0, %s22
      %p19 = scmp.ge.s32.totalorder %s18, 4
      %s25 = sphi 0, %s37
      %s26 = sphi 0, %s33
      %s27 = sphi 0, %s25
      %s28 = sphi 0, %s26
      %s29 = sphi 0, %s27
      %s30 = sphi 0, %s28
      %s42 = sphi 0, %s44
      %s45 = sphi 0, %s42
      %s46 = sphi 0, %s45
      %s62 = sphi 0, %s46
      %s70 = sphi 0, %s72
      %s73 = sphi 0, %s70
      %s74 = sphi 0, %s73
      %s90 = sphi 0, %s74
      %s94 = sphi 0, %s94
      %s96 = sphi 0, %s94
      %s97 = sphi 0, %s96
      %s111 = sphi 0, %s97
      %s115 = sphi 0, %s115
      %s117 = sphi 0, %s115
      %s118 = sphi 0, %s117
      %s132 = sphi 0, %s118
      %s136 = sphi 0, %s136
      %s138 = sphi 0, %s136
      %s139 = sphi 0, %s138
      %s153 = sphi 0, %s139
      %s157 = sphi 0, %s157
      %s159 = sphi 0, %s157
      %s160 = sphi 0, %s159
      %s174 = sphi 0, %s160
      %s182 = sphi 0, %s184
      %s185 = sphi 0, %s182
      %s186 = sphi 0, %s185
      %s202 = sphi 0, %s186
    $region4: #{tpu_custom_call.1} parent=1 // loop_header_branch
      %21 = sbr.rel (%p19) target = $region8
    $region5: #{tpu_custom_call.1} parent=1 // loop_body
      %s23 = ssub.s32 %s18, 1
      %s24 = ssub.s32 %s18, 2
      %s31 = sadd.s32 1, %s26
      %p32 = scmp.ge.s32.totalorder %s31, 1
      %s33 = scalar_select %p32, 0, %s31
      %s34 = sadd.s32 1, %s25
      %s35 = scalar_select %p32, %s34, %s25
      %p36 = scmp.ge.s32.totalorder %s35, 2
      %s37 = scalar_select %p36, 0, %s35
      %s38 = ssub.s32 %s25, %s37
      %s39 = ssub.s32 %s26, %s33
      %s40 = sor.u32 %s38, %s39
      %p41 = scmp.eq.s32.totalorder %s40, 0
      %s43 = sadd.s32 %s42, 1
      %s44 = scalar_select %p41, %s42, %s43
      %p47 = pneg %p41
      %p48 = scmp.eq.s32.totalorder %s18, 1
      %p49 = por %p47, %p48
      %p50 = scmp.ne.s32.totalorder %s42, %s45
      %p51 = scmp.eq.s32.totalorder %s18, 0
      %p52 = por %p50, %p51
      %p53 = scmp.ne.s32.totalorder %s42, %s45
      %p54 = scmp.eq.s32.totalorder %s23, 1
      %p55 = por %p53, %p54
      %p56 = scmp.ne.s32.totalorder %s45, %s46
      %p57 = scmp.eq.s32.totalorder %s23, 0
      %p58 = por %p56, %p57
      %p59 = scmp.ne.s32.totalorder %s45, %s46
      %p60 = scmp.eq.s32.totalorder %s24, 1
      %p61 = por %p59, %p60
      %p63 = scmp.ne.s32.totalorder %s46, %s62
      %p64 = scmp.eq.s32.totalorder %s24, 0
      %p65 = por %p63, %p64
      %s66 = ssub.s32 %s25, %s37
      %s67 = ssub.s32 %s26, %s33
      %s68 = sor.u32 %s66, %s67
      %p69 = scmp.eq.s32.totalorder %s68, 0
      %s71 = sadd.s32 %s70, 1
      %s72 = scalar_select %p69, %s70, %s71
      %p75 = pneg %p69
      %p76 = scmp.eq.s32.totalorder %s18, 1
      %p77 = por %p75, %p76
      %p78 = scmp.ne.s32.totalorder %s70, %s73
      %p79 = scmp.eq.s32.totalorder %s18, 0
      %p80 = por %p78, %p79
      %p81 = scmp.ne.s32.totalorder %s70, %s73
      %p82 = scmp.eq.s32.totalorder %s23, 1
      %p83 = por %p81, %p82
      %p84 = scmp.ne.s32.totalorder %s73, %s74
      %p85 = scmp.eq.s32.totalorder %s23, 0
      %p86 = por %p84, %p85
      %p87 = scmp.ne.s32.totalorder %s73, %s74
      %p88 = scmp.eq.s32.totalorder %s24, 1
      %p89 = por %p87, %p88
      %p91 = scmp.ne.s32.totalorder %s74, %s90
      %p92 = scmp.eq.s32.totalorder %s24, 0
      %p93 = por %p91, %p92
      %s95 = sadd.s32 %s94, 1
      %p98 = scmp.eq.s32.totalorder %s18, 1
      %p99 = scmp.ne.s32.totalorder %s94, %s96
      %p100 = scmp.eq.s32.totalorder %s18, 0
      %p101 = por %p99, %p100
      %p102 = scmp.ne.s32.totalorder %s94, %s96
      %p103 = scmp.eq.s32.totalorder %s23, 1
      %p104 = por %p102, %p103
      %p105 = scmp.ne.s32.totalorder %s96, %s97
      %p106 = scmp.eq.s32.totalorder %s23, 0
      %p107 = por %p105, %p106
      %p108 = scmp.ne.s32.totalorder %s96, %s97
      %p109 = scmp.eq.s32.totalorder %s24, 1
      %p110 = por %p108, %p109
      %p112 = scmp.ne.s32.totalorder %s97, %s111
      %p113 = scmp.eq.s32.totalorder %s24, 0
      %p114 = por %p112, %p113
      %s116 = sadd.s32 %s115, 1
      %p119 = scmp.eq.s32.totalorder %s18, 1
      %p120 = scmp.ne.s32.totalorder %s115, %s117
      %p121 = scmp.eq.s32.totalorder %s18, 0
      %p122 = por %p120, %p121
      %p123 = scmp.ne.s32.totalorder %s115, %s117
      %p124 = scmp.eq.s32.totalorder %s23, 1
      %p125 = por %p123, %p124
      %p126 = scmp.ne.s32.totalorder %s117, %s118
      %p127 = scmp.eq.s32.totalorder %s23, 0
      %p128 = por %p126, %p127
      %p129 = scmp.ne.s32.totalorder %s117, %s118
      %p130 = scmp.eq.s32.totalorder %s24, 1
      %p131 = por %p129, %p130
      %p133 = scmp.ne.s32.totalorder %s118, %s132
      %p134 = scmp.eq.s32.totalorder %s24, 0
      %p135 = por %p133, %p134
      %s137 = sadd.s32 %s136, 1
      %p140 = scmp.eq.s32.totalorder %s18, 1
      %p141 = scmp.ne.s32.totalorder %s136, %s138
      %p142 = scmp.eq.s32.totalorder %s18, 0
      %p143 = por %p141, %p142
      %p144 = scmp.ne.s32.totalorder %s136, %s138
      %p145 = scmp.eq.s32.totalorder %s23, 1
      %p146 = por %p144, %p145
      %p147 = scmp.ne.s32.totalorder %s138, %s139
      %p148 = scmp.eq.s32.totalorder %s23, 0
      %p149 = por %p147, %p148
      %p150 = scmp.ne.s32.totalorder %s138, %s139
      %p151 = scmp.eq.s32.totalorder %s24, 1
      %p152 = por %p150, %p151
      %p154 = scmp.ne.s32.totalorder %s139, %s153
      %p155 = scmp.eq.s32.totalorder %s24, 0
      %p156 = por %p154, %p155
      %s158 = sadd.s32 %s157, 1
      %p161 = scmp.eq.s32.totalorder %s18, 1
      %p162 = scmp.ne.s32.totalorder %s157, %s159
      %p163 = scmp.eq.s32.totalorder %s18, 0
      %p164 = por %p162, %p163
      %p165 = scmp.ne.s32.totalorder %s157, %s159
      %p166 = scmp.eq.s32.totalorder %s23, 1
      %p167 = por %p165, %p166
      %p168 = scmp.ne.s32.totalorder %s159, %s160
      %p169 = scmp.eq.s32.totalorder %s23, 0
      %p170 = por %p168, %p169
      %p171 = scmp.ne.s32.totalorder %s159, %s160
      %p172 = scmp.eq.s32.totalorder %s24, 1
      %p173 = por %p171, %p172
      %p175 = scmp.ne.s32.totalorder %s160, %s174
      %p176 = scmp.eq.s32.totalorder %s24, 0
      %p177 = por %p175, %p176
      %s178 = ssub.s32 %s25, %s37
      %s179 = ssub.s32 %s26, %s33
      %s180 = sor.u32 %s178, %s179
      %p181 = scmp.eq.s32.totalorder %s180, 0
      %s183 = sadd.s32 %s182, 1
      %s184 = scalar_select %p181, %s182, %s183
      %p187 = pneg %p181
      %p188 = scmp.eq.s32.totalorder %s18, 1
      %p189 = por %p187, %p188
      %p190 = scmp.ne.s32.totalorder %s182, %s185
      %p191 = scmp.eq.s32.totalorder %s18, 0
      %p192 = por %p190, %p191
      %p193 = scmp.ne.s32.totalorder %s182, %s185
      %p194 = scmp.eq.s32.totalorder %s23, 1
      %p195 = por %p193, %p194
      %p196 = scmp.ne.s32.totalorder %s185, %s186
      %p197 = scmp.eq.s32.totalorder %s23, 0
      %p198 = por %p196, %p197
      %p199 = scmp.ne.s32.totalorder %s185, %s186
      %p200 = scmp.eq.s32.totalorder %s24, 1
      %p201 = por %p199, %p200
      %p203 = scmp.ne.s32.totalorder %s186, %s202
      %p204 = scmp.eq.s32.totalorder %s24, 0
      %p205 = por %p203, %p204
      %p206 = scmp.le.s32.totalorder 1, %s18
      %p207 = scmp.lt.s32.totalorder %s18, 3
      %p208 = pnand %p206, %p207
      %p209 = pneg %p208
      // Predicated region
      $region9: #{tpu_custom_call.1} parent=5 // pred_check
        _
      $region10: #{tpu_custom_call.1} parent=5 // pred_check_branch
        %211 = sbr.rel (%p208) target = $region12
      $region11: #{tpu_custom_call.1} parent=5 // pred_region
        %s212 = ssub.s32 %s18, 1
        // Predicated region
        $region13: #{tpu_custom_call.1} parent=11 // pred_check
          %p213 = pneg %p107
        $region14: #{tpu_custom_call.1} parent=11 // pred_check_branch
          %215 = sbr.rel (%p213) target = $region16
        $region15: #{tpu_custom_call.1} parent=11 // pred_region
          _
        $region16: #{tpu_custom_call.1} parent=11 // pred_fallthru
          _
        // Predicated region
        $region17: #{tpu_custom_call.1} parent=11 // pred_check
          %p216 = pneg %p128
        $region18: #{tpu_custom_call.1} parent=11 // pred_check_branch
          %218 = sbr.rel (%p216) target = $region20
        $region19: #{tpu_custom_call.1} parent=11 // pred_region
          _
        $region20: #{tpu_custom_call.1} parent=11 // pred_fallthru
          _
        // Predicated region
        $region21: #{tpu_custom_call.1} parent=11 // pred_check
          %p219 = pneg %p149
        $region22: #{tpu_custom_call.1} parent=11 // pred_check_branch
          %221 = sbr.rel (%p219) target = $region24
        $region23: #{tpu_custom_call.1} parent=11 // pred_region
          _
        $region24: #{tpu_custom_call.1} parent=11 // pred_fallthru
          _
        // Predicated region
        $region25: #{tpu_custom_call.1} parent=11 // pred_check
          %p222 = pneg %p170
        $region26: #{tpu_custom_call.1} parent=11 // pred_check_branch
          %224 = sbr.rel (%p222) target = $region28
        $region27: #{tpu_custom_call.1} parent=11 // pred_region
          _
        $region28: #{tpu_custom_call.1} parent=11 // pred_fallthru
          _
      $region12: #{tpu_custom_call.1} parent=5 // pred_fallthru
        _
      %p225 = scmp.lt.s32.totalorder %s18, 2
      // Predicated region
      $region29: #{tpu_custom_call.1} parent=5 // pred_check
        %p226 = pneg %p225
      $region30: #{tpu_custom_call.1} parent=5 // pred_check_branch
        %228 = sbr.rel (%p226) target = $region32
      $region31: #{tpu_custom_call.1} parent=5 // pred_region
        // Predicated region
        $region33: #{tpu_custom_call.1} parent=31 // pred_check
          %p229 = pneg %p52
        $region34: #{tpu_custom_call.1} parent=31 // pred_check_branch
          %231 = sbr.rel (%p229) target = $region36
        $region35: #{tpu_custom_call.1} parent=31 // pred_region
          %p232 = scmp.lt.s32.totalorder %s25, 1
          %s233 = scalar_select %p232, %s25, 1
          %p234 = scmp.lt.s32.totalorder %s26, 0
          %s235 = scalar_select %p234, %s26, 0
          %s236 = sadd.s32 %s235, %s233
          %s237 = smul.addr %s236, 4
          %s238 = scalar_lea.vmem %s0, %s237
        $region36: #{tpu_custom_call.1} parent=31 // pred_fallthru
          _
        // Predicated region
        $region37: #{tpu_custom_call.1} parent=31 // pred_check
          %p239 = pneg %p80
        $region38: #{tpu_custom_call.1} parent=31 // pred_check_branch
          %241 = sbr.rel (%p239) target = $region40
        $region39: #{tpu_custom_call.1} parent=31 // pred_region
          %s242 = sand.u32 %s70, 1
          %s243 = scalar_lea.sflag [#allocation3], %s242
          %s244 = sand.u32 %s70, 1
          %s245 = smul.addr %s244, 4
          %s246 = scalar_lea.vmem [#allocation2], %s245
          %s248 = ssub.s32 64, 64
          %249 = vsyncadd %s243, %s248
          %s250 = sadd.s32 %s26, %s25
          %s251 = smul.addr %s250, 64
          %s252 = scalar_lea.hbm %s1, %s251
          %s254 = sshll.u32 %s246, 4
          %s255 = int_to_ptr.vmem [resolvable:$true] %s254
          %257 = dma.hbm_to_vmem [thread:$0]  %s252, 64, %s255, %s243
        $region40: #{tpu_custom_call.1} parent=31 // pred_fallthru
          _
      $region32: #{tpu_custom_call.1} parent=5 // pred_fallthru
        _
      %p258 = scmp.le.s32.totalorder 1, %s18
      %p259 = scmp.lt.s32.totalorder %s18, 3
      %p260 = pnand %p258, %p259
      %p261 = pneg %p260
      // Predicated region
      $region41: #{tpu_custom_call.1} parent=5 // pred_check
        _
      $region42: #{tpu_custom_call.1} parent=5 // pred_check_branch
        %263 = sbr.rel (%p260) target = $region44
      $region43: #{tpu_custom_call.1} parent=5 // pred_region
        %s264 = ssub.s32 %s18, 1
        %s265 = sand.u32 %s73, 1
        %s266 = scalar_lea.sflag [#allocation3], %s265
        %s267 = sand.u32 %s73, 1
        %s268 = smul.addr %s267, 4
        %s269 = scalar_lea.vmem [#allocation2], %s268
        // Predicated region
        $region45: #{tpu_custom_call.1} parent=43 // pred_check
          %p270 = pneg %p86
        $region46: #{tpu_custom_call.1} parent=43 // pred_check_branch
          %272 = sbr.rel (%p270) target = $region48
        $region47: #{tpu_custom_call.1} parent=43 // pred_region
          %273 = dma.done %s266, 64
        $region48: #{tpu_custom_call.1} parent=43 // pred_fallthru
          _
        %p274 = scmp.lt.s32.totalorder %s27, 1
        %s275 = scalar_select %p274, %s27, 1
        %p276 = scmp.lt.s32.totalorder %s28, 0
        %s277 = scalar_select %p276, %s28, 0
        %s278 = sadd.s32 %s277, %s275
        %s279 = smul.addr %s278, 4
        %s280 = scalar_lea.vmem %s0, %s279
        %p281 = pneg %p58
        %p282 = pneg %p55
        %s283 = sand.u32 %s73, 1
        %s284 = scalar_lea.sflag [#allocation3], %s283
        %s285 = sand.u32 %s73, 1
        %s286 = smul.addr %s285, 4
        %s287 = scalar_lea.vmem [#allocation2], %s286
        %p288 = pneg %p86
        %p289 = pneg %p83
        %p290 = pneg %p107
        %p291 = pneg %p104
        %p292 = pneg %p128
        %p293 = pneg %p125
        %p294 = pneg %p149
        %p295 = pneg %p146
        %p296 = pneg %p170
        %p297 = pneg %p167
        %p298 = pneg %p198
        %p299 = pneg %p195
        %s300 = sand.u32 %s185, 1
        %s301 = scalar_lea.sflag [#allocation4], %s300
        %s302 = sand.u32 %s185, 1
        %s303 = smul.addr %s302, 4
        %s304 = scalar_lea.vmem [#allocation5], %s303
        %p305 = scmp.lt.s32.totalorder %s27, 1
        %s306 = scalar_select %p305, %s27, 1
        %p307 = scmp.lt.s32.totalorder %s28, 0
        %s308 = scalar_select %p307, %s28, 0
        %s309 = sadd.s32 %s308, %s306
        %s310 = smul.addr %s309, 4
        %s311 = scalar_lea.vmem %s0, %s310
        %s312 = smul.u32 %s28, 16
        %s313 = ssub.s32 %s312, 3
        %v314 = vlaneseq
        %v315 = vand.u32 %v314, 127
        %v316 = vstv %s313
        %v317 = vadd.s32 %v316, %v315
        %vm318 = vcmp.ge.s32.totalorder %v317, 0
        %vm319 = vcmp.lt.s32.totalorder %v317, 16
        %vm320 = vmand %vm318, %vm319
        %v321 = vld [vmem:[%s2] sm:$0xf]
        %v322 = vld [vmem:[%s4] sm:$0xf]
        %v323 = vld [vmem:[%s3] sm:$0xf]
        %v324 = vld [vmem:[%s5] sm:$0xf]
        %v325 = vld [vmem:[%s311] sm:$0xf]
        %v326 = vld [vmem:[%s269] sm:$0xf]
        %328 = vrot.lane.b32.xlu0 %v326, 4
        %v329 = vpop.permute.xlu0 %328
        %332 = vrot.lane.b32.xlu0 %v325, 16
        %v333 = vpop.permute.xlu0 %332
        %vm335 = vcmask 31744
        %v336 = vsel %vm335, %v325, %v329
        %vm337 = vcmask 162816
        %v338 = vsel %vm337, %v336, %v333
        %vm339 = vcmp.gt.f32.partialorder %v338, 0.0
        %v340 = vmul.f32 %v338, 0.1
        %v341 = vsel %vm339, %v338, %v340
        %v343 = vrot.slane %v341, 4
        %344 = vrot.lane.b32.xlu0 %v343, 127
        %v345 = vpop.permute.xlu0 %344
        %347 = vrot.lane.b32.xlu0 %v341, 126
        %v348 = vpop.permute.xlu0 %347
        %vm349 = vcmask 1043456
        %v350 = vsel %vm349, %v341, %v345
        %352 = vset.pattern.permute.xlu0 0
        %353 = vperm.xlu0 %352, %v323
        %v354 = vpop.permute.xlu0 %353
        %vm356 = vcmask 97280
        %v358 = vsel %vm356, %v321, 0
        %v360 = vsel %vm349, %v348, 0
        %362 = vmatprep.subr.mxu0 0.0
        %363 = vmatpush1.msra.mxu0 0.0
        %364 = vmatprep.subr.mxu0 0.0
        %365 = vmatpush1.msra.mxu0 0.0
        %366 = vmatprep.subr.mxu0 0.0
        %367 = vmatpush1.msra.mxu0 0.0
        %368 = vmatprep.subr.mxu0 0.0
        %369 = vmatpush1.msra.mxu0 0.0
        %370 = vmatprep.subr.mxu0 0.0
        %371 = vmatpush1.msra.mxu0 0.0
        %372 = vmatprep.subr.mxu0 0.0
        %373 = vmatpush1.msra.mxu0 0.0
        %374 = vmatprep.subr.mxu0 0.0
        %375 = vmatpush1.msra.mxu0 0.0
        %376 = vmatprep.subr.mxu0 0.0
        %377 = vmatpush1.msra.mxu0 0.0
        %378 = vmatprep.subr.mxu0 0.0
        %379 = vmatpush1.msra.mxu0 0.0
        %380 = vmatprep.subr.mxu0 0.0
        %381 = vmatpush1.msra.mxu0 0.0
        %382 = vmatprep.subr.mxu0 0.0
        %383 = vmatpush1.msra.mxu0 0.0
        %384 = vmatprep.subr.mxu0 0.0
        %385 = vmatpush1.msra.mxu0 0.0
        %386 = vmatprep.subr.mxu0 0.0
        %387 = vmatpush1.msra.mxu0 0.0
        %388 = vmatprep.subr.mxu0 0.0
        %389 = vmatpush1.msra.mxu0 0.0
        %390 = vmatprep.subr.mxu0 0.0
        %391 = vmatpush1.msra.mxu0 %v360
        %392 = vmatprep.subr.mxu0 0.0
        %393 = vmatpush1.msra.mxu0 %v350
        %394 = vmatprep.subr.mxu0 0.0
        %395 = vmatpush2.msra.mxu0 0.0
        %396 = vmatprep.subr.mxu0 0.0
        %397 = vmatpush2.msra.mxu0 0.0
        %398 = vmatprep.subr.mxu0 0.0
        %399 = vmatpush2.msra.mxu0 0.0
        %400 = vmatprep.subr.mxu0 0.0
        %401 = vmatpush2.msra.mxu0 0.0
        %402 = vmatprep.subr.mxu0 0.0
        %403 = vmatpush2.msra.mxu0 0.0
        %404 = vmatprep.subr.mxu0 0.0
        %405 = vmatpush2.msra.mxu0 0.0
        %406 = vmatprep.subr.mxu0 0.0
        %407 = vmatpush2.msra.mxu0 0.0
        %408 = vmatprep.subr.mxu0 0.0
        %409 = vmatpush2.msra.mxu0 0.0
        %410 = vmatprep.subr.mxu0 0.0
        %411 = vmatpush2.msra.mxu0 0.0
        %412 = vmatprep.subr.mxu0 0.0
        %413 = vmatpush2.msra.mxu0 0.0
        %414 = vmatprep.subr.mxu0 0.0
        %415 = vmatpush2.msra.mxu0 0.0
        %416 = vmatprep.subr.mxu0 0.0
        %417 = vmatpush2.msra.mxu0 0.0
        %418 = vmatprep.subr.mxu0 0.0
        %419 = vmatpush2.msra.mxu0 0.0
        %420 = vmatprep.subr.mxu0 0.0
        %421 = vmatpush2.msra.mxu0 0.0
        %422 = vmatprep.subr.mxu0 0.0
        %423 = vmatpush2.msra.mxu0 0.0
        %424 = vmatprep.subr.mxu0 0.0
        %425 = vmatpush2.msra.mxu0 0.0
        %426 = vmatprep.mubr.f32.mxu0 0.0
        %427 = vmatmul.mubr.f32.gmra.mxu0 %v358
        %v428 = vpop.f32.mrf.mxu0
        %v429 = vadd.f32 %v354, %v428
        %v430 = vpop.f32.mrf.mxu0
        %431 = vdwg.mxu0
        %433 = vrot.lane.b32.xlu0 %v338, 127
        %v434 = vpop.permute.xlu0 %433
        %v436 = vadd.f32 %v429, %v434
        %v437 = vsel %vm320, 1, 0
        %vm438 = vcmp.eq.s32.totalorder %v437, 1
        %v439 = vsel %vm438, %v436, 0.0
        %vm440 = vcmp.gt.f32.partialorder %v439, 0.0
        %v441 = vmul.f32 %v439, 0.1
        %v442 = vsel %vm440, %v439, %v441
        %v444 = vrot.slane %v442, 4
        %445 = vrot.lane.b32.xlu0 %v444, 125
        %v446 = vpop.permute.xlu0 %445
        %448 = vrot.lane.b32.xlu0 %v442, 122
        %v449 = vpop.permute.xlu0 %448
        %v450 = vsel %vm349, %v442, %v446
        %452 = vset.pattern.permute.xlu0 0
        %453 = vperm.xlu0 %452, %v324
        %v454 = vpop.permute.xlu0 %453
        %v457 = vsel %vm356, %v322, 0
        %v459 = vsel %vm349, %v449, 0
        %461 = vmatprep.subr.mxu0 0.0
        %462 = vmatpush1.msra.mxu0 0.0
        %463 = vmatprep.subr.mxu0 0.0
        %464 = vmatpush1.msra.mxu0 0.0
        %465 = vmatprep.subr.mxu0 0.0
        %466 = vmatpush1.msra.mxu0 0.0
        %467 = vmatprep.subr.mxu0 0.0
        %468 = vmatpush1.msra.mxu0 0.0
        %469 = vmatprep.subr.mxu0 0.0
        %470 = vmatpush1.msra.mxu0 0.0
        %471 = vmatprep.subr.mxu0 0.0
        %472 = vmatpush1.msra.mxu0 0.0
        %473 = vmatprep.subr.mxu0 0.0
        %474 = vmatpush1.msra.mxu0 0.0
        %475 = vmatprep.subr.mxu0 0.0
        %476 = vmatpush1.msra.mxu0 0.0
        %477 = vmatprep.subr.mxu0 0.0
        %478 = vmatpush1.msra.mxu0 0.0
        %479 = vmatprep.subr.mxu0 0.0
        %480 = vmatpush1.msra.mxu0 0.0
        %481 = vmatprep.subr.mxu0 0.0
        %482 = vmatpush1.msra.mxu0 0.0
        %483 = vmatprep.subr.mxu0 0.0
        %484 = vmatpush1.msra.mxu0 0.0
        %485 = vmatprep.subr.mxu0 0.0
        %486 = vmatpush1.msra.mxu0 0.0
        %487 = vmatprep.subr.mxu0 0.0
        %488 = vmatpush1.msra.mxu0 0.0
        %489 = vmatprep.subr.mxu0 0.0
        %490 = vmatpush1.msra.mxu0 %v459
        %491 = vmatprep.subr.mxu0 0.0
        %492 = vmatpush1.msra.mxu0 %v450
        %493 = vmatprep.subr.mxu0 0.0
        %494 = vmatpush2.msra.mxu0 0.0
        %495 = vmatprep.subr.mxu0 0.0
        %496 = vmatpush2.msra.mxu0 0.0
        %497 = vmatprep.subr.mxu0 0.0
        %498 = vmatpush2.msra.mxu0 0.0
        %499 = vmatprep.subr.mxu0 0.0
        %500 = vmatpush2.msra.mxu0 0.0
        %501 = vmatprep.subr.mxu0 0.0
        %502 = vmatpush2.msra.mxu0 0.0
        %503 = vmatprep.subr.mxu0 0.0
        %504 = vmatpush2.msra.mxu0 0.0
        %505 = vmatprep.subr.mxu0 0.0
        %506 = vmatpush2.msra.mxu0 0.0
        %507 = vmatprep.subr.mxu0 0.0
        %508 = vmatpush2.msra.mxu0 0.0
        %509 = vmatprep.subr.mxu0 0.0
        %510 = vmatpush2.msra.mxu0 0.0
        %511 = vmatprep.subr.mxu0 0.0
        %512 = vmatpush2.msra.mxu0 0.0
        %513 = vmatprep.subr.mxu0 0.0
        %514 = vmatpush2.msra.mxu0 0.0
        %515 = vmatprep.subr.mxu0 0.0
        %516 = vmatpush2.msra.mxu0 0.0
        %517 = vmatprep.subr.mxu0 0.0
        %518 = vmatpush2.msra.mxu0 0.0
        %519 = vmatprep.subr.mxu0 0.0
        %520 = vmatpush2.msra.mxu0 0.0
        %521 = vmatprep.subr.mxu0 0.0
        %522 = vmatpush2.msra.mxu0 0.0
        %523 = vmatprep.subr.mxu0 0.0
        %524 = vmatpush2.msra.mxu0 0.0
        %525 = vmatprep.mubr.f32.mxu0 0.0
        %526 = vmatmul.mubr.f32.gmra.mxu0 %v457
        %v527 = vpop.f32.mrf.mxu0
        %v528 = vadd.f32 %v454, %v527
        %v529 = vpop.f32.mrf.mxu0
        %530 = vdwg.mxu0
        %532 = vrot.lane.b32.xlu0 %v439, 125
        %v533 = vpop.permute.xlu0 %532
        %v535 = vadd.f32 %v528, %v533
        %vm536 = vcmask 125952
        %537 = vst.msk [vmem:[%s304] sm:$0xf] %vm536, %v535
        %s538 = sand.u32 %s185, 1
        %s539 = scalar_lea.sflag [#allocation4], %s538
        %s540 = sand.u32 %s185, 1
        %s541 = smul.addr %s540, 4
        %s542 = scalar_lea.vmem [#allocation5], %s541
        // Predicated region
        $region49: #{tpu_custom_call.1} parent=43 // pred_check
          %p543 = pneg %p195
        $region50: #{tpu_custom_call.1} parent=43 // pred_check_branch
          %545 = sbr.rel (%p543) target = $region52
        $region51: #{tpu_custom_call.1} parent=43 // pred_region
          %s547 = ssub.s32 64, 64
          %548 = vsyncadd %s539, %s547
          %s549 = sadd.s32 %s28, %s27
          %s550 = smul.addr %s549, 64
          %s551 = scalar_lea.hbm %s6, %s550
          %s553 = sshll.u32 %s542, 4
          %s554 = int_to_ptr.vmem [resolvable:$true] %s553
          %556 = dma.vmem_to_hbm [thread:$0]  %s554, 64, %s551, %s539
        $region52: #{tpu_custom_call.1} parent=43 // pred_fallthru
          _
      $region44: #{tpu_custom_call.1} parent=5 // pred_fallthru
        _
      %p557 = scmp.le.s32.totalorder 2, %s18
      // Predicated region
      $region53: #{tpu_custom_call.1} parent=5 // pred_check
        %p558 = pneg %p557
      $region54: #{tpu_custom_call.1} parent=5 // pred_check_branch
        %560 = sbr.rel (%p558) target = $region56
      $region55: #{tpu_custom_call.1} parent=5 // pred_region
        %s561 = ssub.s32 %s18, 2
        // Predicated region
        $region57: #{tpu_custom_call.1} parent=55 // pred_check
          %p562 = pneg %p201
        $region58: #{tpu_custom_call.1} parent=55 // pred_check_branch
          %564 = sbr.rel (%p562) target = $region60
        $region59: #{tpu_custom_call.1} parent=55 // pred_region
          %s565 = sand.u32 %s186, 1
          %s566 = scalar_lea.sflag [#allocation4], %s565
          %s567 = sand.u32 %s186, 1
          %s568 = smul.addr %s567, 4
          %s569 = scalar_lea.vmem [#allocation5], %s568
          %570 = dma.done %s566, 64
        $region60: #{tpu_custom_call.1} parent=55 // pred_fallthru
          _
      $region56: #{tpu_custom_call.1} parent=5 // pred_fallthru
        _
    $region6: #{tpu_custom_call.1} parent=1 // loop_footer
      %s22 = sadd.s32 1, %s18
    $region7: #{tpu_custom_call.1} parent=1 // loop_footer_branch
      %17 = sbr.rel target = $region3
    $region8: #{tpu_custom_call.1} parent=1 // loop_exit
      _
    %571 = vsyncpa [#allocation3], 1
    %s572 = scalar_lea.sflag [#allocation3], 1
    %573 = vsyncpa %s572, 1
    %574 = vsyncpa [#allocation4], 1
    %s575 = scalar_lea.sflag [#allocation4], 1
    %576 = vsyncpa %s575, 1

// kernel: tpu_custom_call.1
$region0: #{tpu_custom_call.1}
  #allocation0 [shape = 'u32[]', space=smem, size = 0x4, offset = 0x4, fixed_abs, tag = 'smem constant byte address 0x4 - core index']
  #allocation1 [shape = 'u32[144,128]{1,0:T(1,128)}', space=vmem, size = 0x12000, scoped, tag = 'internal scratch']
  %s0 = inlined_call_operand.vmem [shape: f32[2,1,4,8], index: 0, kind: input, shape index: {}]
  %s1 = inlined_call_operand.hbm [shape: f32[2,4,16], index: 1, kind: input, shape index: {}]
  %s2 = inlined_call_operand.vmem [shape: f32[4,12], index: 2, kind: input, shape index: {}]
  %s3 = inlined_call_operand.vmem [shape: f32[4,1], index: 3, kind: input, shape index: {}]
  %s4 = inlined_call_operand.vmem [shape: f32[4,12], index: 4, kind: input, shape index: {}]
  %s5 = inlined_call_operand.vmem [shape: f32[4,1], index: 5, kind: input, shape index: {}]
  %s6 = inlined_call_operand.hbm [shape: f32[2,4,16], index: 6, kind: output, shape index: {}]
  %s7 = sld [smem:[#allocation0]]
  $region61: #{tpu_custom_call.1} parent=0
    _
  %s9 = ssub.s32 1, %s7
  %s10 = scalar_select 0, %s9, %s7
  $region1: #{tpu_custom_call.1} parent=0
    #allocation2 [shape = 'u8[4096]{0}', space=vmem, size = 0x1000, scoped, tag = 'input window, operand 1']
    #allocation3 [shape = 's32[2]{0}', space=sflag, size = 0x8, scoped, tag = 'scoped memory for tpu_custom_call.1']
    #allocation4 [shape = 's32[2]{0}', space=sflag, size = 0x8, scoped, tag = 'scoped memory for tpu_custom_call.1']
    #allocation5 [shape = 'u8[4096]{0}', space=vmem, size = 0x1000, scoped, tag = 'output window, operand 0']
    %11 = vsyncpa [#allocation3], 0
    %s12 = scalar_lea.sflag [#allocation3], 1
    %13 = vsyncpa %s12, 0
    %14 = vsyncpa [#allocation4], 0
    %s15 = scalar_lea.sflag [#allocation4], 1
    %16 = vsyncpa %s15, 0
    loop: start=0, step=1, limit=4
    $region2: #{tpu_custom_call.1} parent=1 // loop_pre_header
      _
    $region3: #{tpu_custom_call.1} parent=1 // loop_header
      %s18 = sphi 0, %s22
      %p19 = scmp.ge.s32.totalorder %s18, 4
      %s25 = sphi 0, %s37
      %s26 = sphi 0, %s33
      %s27 = sphi 0, %s25
      %s28 = sphi 0, %s26
      %s29 = sphi 0, %s27
      %s30 = sphi 0, %s28
      %s42 = sphi 0, %s44
      %s45 = sphi 0, %s42
      %s46 = sphi 0, %s45
      %s62 = sphi 0, %s46
      %s70 = sphi 0, %s72
      %s73 = sphi 0, %s70
      %s74 = sphi 0, %s73
      %s90 = sphi 0, %s74
      %s94 = sphi 0, %s94
      %s96 = sphi 0, %s94
      %s97 = sphi 0, %s96
      %s111 = sphi 0, %s97
      %s115 = sphi 0, %s115
      %s117 = sphi 0, %s115
      %s118 = sphi 0, %s117
      %s132 = sphi 0, %s118
      %s136 = sphi 0, %s136
      %s138 = sphi 0, %s136
      %s139 = sphi 0, %s138
      %s153 = sphi 0, %s139
      %s157 = sphi 0, %s157
      %s159 = sphi 0, %s157
      %s160 = sphi 0, %s159
      %s174 = sphi 0, %s160
      %s182 = sphi 0, %s184
      %s185 = sphi 0, %s182
      %s186 = sphi 0, %s185
      %s202 = sphi 0, %s186
    $region4: #{tpu_custom_call.1} parent=1 // loop_header_branch
      %21 = sbr.rel (%p19) target = $region8
    $region5: #{tpu_custom_call.1} parent=1 // loop_body
      %s23 = ssub.s32 %s18, 1
      %s24 = ssub.s32 %s18, 2
      %s31 = sadd.s32 1, %s26
      %p32 = scmp.ge.s32.totalorder %s31, 1
      %s33 = scalar_select %p32, 0, %s31
      %s34 = sadd.s32 1, %s25
      %s35 = scalar_select %p32, %s34, %s25
      %p36 = scmp.ge.s32.totalorder %s35, 2
      %s37 = scalar_select %p36, 0, %s35
      %s38 = ssub.s32 %s25, %s37
      %s39 = ssub.s32 %s26, %s33
      %s40 = sor.u32 %s38, %s39
      %p41 = scmp.eq.s32.totalorder %s40, 0
      %s43 = sadd.s32 %s42, 1
      %s44 = scalar_select %p41, %s42, %s43
      %p47 = pneg %p41
      %p48 = scmp.eq.s32.totalorder %s18, 1
      %p49 = por %p47, %p48
      %p50 = scmp.ne.s32.totalorder %s42, %s45
      %p51 = scmp.eq.s32.totalorder %s18, 0
      %p52 = por %p50, %p51
      %p53 = scmp.ne.s32.totalorder %s42, %s45
      %p54 = scmp.eq.s32.totalorder %s23, 1
      %p55 = por %p53, %p54
      %p56 = scmp.ne.s32.totalorder %s45, %s46
      %p57 = scmp.eq.s32.totalorder %s23, 0
      %p58 = por %p56, %p57
      %p59 = scmp.ne.s32.totalorder %s45, %s46
      %p60 = scmp.eq.s32.totalorder %s24, 1
      %p61 = por %p59, %p60
      %p63 = scmp.ne.s32.totalorder %s46, %s62
      %p64 = scmp.eq.s32.totalorder %s24, 0
      %p65 = por %p63, %p64
      %s66 = ssub.s32 %s25, %s37
      %s67 = ssub.s32 %s26, %s33
      %s68 = sor.u32 %s66, %s67
      %p69 = scmp.eq.s32.totalorder %s68, 0
      %s71 = sadd.s32 %s70, 1
      %s72 = scalar_select %p69, %s70, %s71
      %p75 = pneg %p69
      %p76 = scmp.eq.s32.totalorder %s18, 1
      %p77 = por %p75, %p76
      %p78 = scmp.ne.s32.totalorder %s70, %s73
      %p79 = scmp.eq.s32.totalorder %s18, 0
      %p80 = por %p78, %p79
      %p81 = scmp.ne.s32.totalorder %s70, %s73
      %p82 = scmp.eq.s32.totalorder %s23, 1
      %p83 = por %p81, %p82
      %p84 = scmp.ne.s32.totalorder %s73, %s74
      %p85 = scmp.eq.s32.totalorder %s23, 0
      %p86 = por %p84, %p85
      %p87 = scmp.ne.s32.totalorder %s73, %s74
      %p88 = scmp.eq.s32.totalorder %s24, 1
      %p89 = por %p87, %p88
      %p91 = scmp.ne.s32.totalorder %s74, %s90
      %p92 = scmp.eq.s32.totalorder %s24, 0
      %p93 = por %p91, %p92
      %s95 = sadd.s32 %s94, 1
      %p98 = scmp.eq.s32.totalorder %s18, 1
      %p99 = scmp.ne.s32.totalorder %s94, %s96
      %p100 = scmp.eq.s32.totalorder %s18, 0
      %p101 = por %p99, %p100
      %p102 = scmp.ne.s32.totalorder %s94, %s96
      %p103 = scmp.eq.s32.totalorder %s23, 1
      %p104 = por %p102, %p103
      %p105 = scmp.ne.s32.totalorder %s96, %s97
      %p106 = scmp.eq.s32.totalorder %s23, 0
      %p107 = por %p105, %p106
      %p108 = scmp.ne.s32.totalorder %s96, %s97
      %p109 = scmp.eq.s32.totalorder %s24, 1
      %p110 = por %p108, %p109
      %p112 = scmp.ne.s32.totalorder %s97, %s111
      %p113 = scmp.eq.s32.totalorder %s24, 0
      %p114 = por %p112, %p113
      %s116 = sadd.s32 %s115, 1
      %p119 = scmp.eq.s32.totalorder %s18, 1
      %p120 = scmp.ne.s32.totalorder %s115, %s117
      %p121 = scmp.eq.s32.totalorder %s18, 0
      %p122 = por %p120, %p121
      %p123 = scmp.ne.s32.totalorder %s115, %s117
      %p124 = scmp.eq.s32.totalorder %s23, 1
      %p125 = por %p123, %p124
      %p126 = scmp.ne.s32.totalorder %s117, %s118
      %p127 = scmp.eq.s32.totalorder %s23, 0
      %p128 = por %p126, %p127
      %p129 = scmp.ne.s32.totalorder %s117, %s118
      %p130 = scmp.eq.s32.totalorder %s24, 1
      %p131 = por %p129, %p130
      %p133 = scmp.ne.s32.totalorder %s118, %s132
      %p134 = scmp.eq.s32.totalorder %s24, 0
      %p135 = por %p133, %p134
      %s137 = sadd.s32 %s136, 1
      %p140 = scmp.eq.s32.totalorder %s18, 1
      %p141 = scmp.ne.s32.totalorder %s136, %s138
      %p142 = scmp.eq.s32.totalorder %s18, 0
      %p143 = por %p141, %p142
      %p144 = scmp.ne.s32.totalorder %s136, %s138
      %p145 = scmp.eq.s32.totalorder %s23, 1
      %p146 = por %p144, %p145
      %p147 = scmp.ne.s32.totalorder %s138, %s139
      %p148 = scmp.eq.s32.totalorder %s23, 0
      %p149 = por %p147, %p148
      %p150 = scmp.ne.s32.totalorder %s138, %s139
      %p151 = scmp.eq.s32.totalorder %s24, 1
      %p152 = por %p150, %p151
      %p154 = scmp.ne.s32.totalorder %s139, %s153
      %p155 = scmp.eq.s32.totalorder %s24, 0
      %p156 = por %p154, %p155
      %s158 = sadd.s32 %s157, 1
      %p161 = scmp.eq.s32.totalorder %s18, 1
      %p162 = scmp.ne.s32.totalorder %s157, %s159
      %p163 = scmp.eq.s32.totalorder %s18, 0
      %p164 = por %p162, %p163
      %p165 = scmp.ne.s32.totalorder %s157, %s159
      %p166 = scmp.eq.s32.totalorder %s23, 1
      %p167 = por %p165, %p166
      %p168 = scmp.ne.s32.totalorder %s159, %s160
      %p169 = scmp.eq.s32.totalorder %s23, 0
      %p170 = por %p168, %p169
      %p171 = scmp.ne.s32.totalorder %s159, %s160
      %p172 = scmp.eq.s32.totalorder %s24, 1
      %p173 = por %p171, %p172
      %p175 = scmp.ne.s32.totalorder %s160, %s174
      %p176 = scmp.eq.s32.totalorder %s24, 0
      %p177 = por %p175, %p176
      %s178 = ssub.s32 %s25, %s37
      %s179 = ssub.s32 %s26, %s33
      %s180 = sor.u32 %s178, %s179
      %p181 = scmp.eq.s32.totalorder %s180, 0
      %s183 = sadd.s32 %s182, 1
      %s184 = scalar_select %p181, %s182, %s183
      %p187 = pneg %p181
      %p188 = scmp.eq.s32.totalorder %s18, 1
      %p189 = por %p187, %p188
      %p190 = scmp.ne.s32.totalorder %s182, %s185
      %p191 = scmp.eq.s32.totalorder %s18, 0
      %p192 = por %p190, %p191
      %p193 = scmp.ne.s32.totalorder %s182, %s185
      %p194 = scmp.eq.s32.totalorder %s23, 1
      %p195 = por %p193, %p194
      %p196 = scmp.ne.s32.totalorder %s185, %s186
      %p197 = scmp.eq.s32.totalorder %s23, 0
      %p198 = por %p196, %p197
      %p199 = scmp.ne.s32.totalorder %s185, %s186
      %p200 = scmp.eq.s32.totalorder %s24, 1
      %p201 = por %p199, %p200
      %p203 = scmp.ne.s32.totalorder %s186, %s202
      %p204 = scmp.eq.s32.totalorder %s24, 0
      %p205 = por %p203, %p204
      %p206 = scmp.le.s32.totalorder 1, %s18
      %p207 = scmp.lt.s32.totalorder %s18, 3
      %p208 = pnand %p206, %p207
      %p209 = pneg %p208
      // Predicated region
      $region9: #{tpu_custom_call.1} parent=5 // pred_check
        _
      $region10: #{tpu_custom_call.1} parent=5 // pred_check_branch
        %211 = sbr.rel (%p208) target = $region12
      $region11: #{tpu_custom_call.1} parent=5 // pred_region
        %s212 = ssub.s32 %s18, 1
        // Predicated region
        $region13: #{tpu_custom_call.1} parent=11 // pred_check
          %p213 = pneg %p107
        $region14: #{tpu_custom_call.1} parent=11 // pred_check_branch
          %215 = sbr.rel (%p213) target = $region16
        $region15: #{tpu_custom_call.1} parent=11 // pred_region
          _
        $region16: #{tpu_custom_call.1} parent=11 // pred_fallthru
          _
        // Predicated region
        $region17: #{tpu_custom_call.1} parent=11 // pred_check
          %p216 = pneg %p128
        $region18: #{tpu_custom_call.1} parent=11 // pred_check_branch
          %218 = sbr.rel (%p216) target = $region20
        $region19: #{tpu_custom_call.1} parent=11 // pred_region
          _
        $region20: #{tpu_custom_call.1} parent=11 // pred_fallthru
          _
        // Predicated region
        $region21: #{tpu_custom_call.1} parent=11 // pred_check
          %p219 = pneg %p149
        $region22: #{tpu_custom_call.1} parent=11 // pred_check_branch
          %221 = sbr.rel (%p219) target = $region24
        $region23: #{tpu_custom_call.1} parent=11 // pred_region
          _
        $region24: #{tpu_custom_call.1} parent=11 // pred_fallthru
          _
        // Predicated region
        $region25: #{tpu_custom_call.1} parent=11 // pred_check
          %p222 = pneg %p170
        $region26: #{tpu_custom_call.1} parent=11 // pred_check_branch
          %224 = sbr.rel (%p222) target = $region28
        $region27: #{tpu_custom_call.1} parent=11 // pred_region
          _
        $region28: #{tpu_custom_call.1} parent=11 // pred_fallthru
          _
      $region12: #{tpu_custom_call.1} parent=5 // pred_fallthru
        _
      %p225 = scmp.lt.s32.totalorder %s18, 2
      // Predicated region
      $region29: #{tpu_custom_call.1} parent=5 // pred_check
        %p226 = pneg %p225
      $region30: #{tpu_custom_call.1} parent=5 // pred_check_branch
        %228 = sbr.rel (%p226) target = $region32
      $region31: #{tpu_custom_call.1} parent=5 // pred_region
        // Predicated region
        $region33: #{tpu_custom_call.1} parent=31 // pred_check
          %p229 = pneg %p52
        $region34: #{tpu_custom_call.1} parent=31 // pred_check_branch
          %231 = sbr.rel (%p229) target = $region36
        $region35: #{tpu_custom_call.1} parent=31 // pred_region
          %p232 = scmp.lt.s32.totalorder %s25, 1
          %s233 = scalar_select %p232, %s25, 1
          %p234 = scmp.lt.s32.totalorder %s26, 0
          %s235 = scalar_select %p234, %s26, 0
          %s236 = sadd.s32 %s235, %s233
          %s237 = smul.addr %s236, 4
          %s238 = scalar_lea.vmem %s0, %s237
        $region36: #{tpu_custom_call.1} parent=31 // pred_fallthru
          _
        // Predicated region
        $region37: #{tpu_custom_call.1} parent=31 // pred_check
          %p239 = pneg %p80
        $region38: #{tpu_custom_call.1} parent=31 // pred_check_branch
          %241 = sbr.rel (%p239) target = $region40
        $region39: #{tpu_custom_call.1} parent=31 // pred_region
          %s242 = sand.u32 %s70, 1
          %s243 = scalar_lea.sflag [#allocation3], %s242
          %s244 = sand.u32 %s70, 1
          %s245 = smul.addr %s244, 4
          %s246 = scalar_lea.vmem [#allocation2], %s245
          %s248 = ssub.s32 64, 64
          %249 = vsyncadd %s243, %s248
          %s250 = sadd.s32 %s26, %s25
          %s251 = smul.addr %s250, 64
          %s252 = scalar_lea.hbm %s1, %s251
          %s254 = sshll.u32 %s246, 4
          %s255 = int_to_ptr.vmem [resolvable:$true] %s254
          %257 = dma.hbm_to_vmem [thread:$0]  %s252, 64, %s255, %s243
        $region40: #{tpu_custom_call.1} parent=31 // pred_fallthru
          _
      $region32: #{tpu_custom_call.1} parent=5 // pred_fallthru
        _
      %p258 = scmp.le.s32.totalorder 1, %s18
      %p259 = scmp.lt.s32.totalorder %s18, 3
      %p260 = pnand %p258, %p259
      %p261 = pneg %p260
      // Predicated region
      $region41: #{tpu_custom_call.1} parent=5 // pred_check
        _
      $region42: #{tpu_custom_call.1} parent=5 // pred_check_branch
        %263 = sbr.rel (%p260) target = $region44
      $region43: #{tpu_custom_call.1} parent=5 // pred_region
        %s264 = ssub.s32 %s18, 1
        %s265 = sand.u32 %s73, 1
        %s266 = scalar_lea.sflag [#allocation3], %s265
        %s267 = sand.u32 %s73, 1
        %s268 = smul.addr %s267, 4
        %s269 = scalar_lea.vmem [#allocation2], %s268
        // Predicated region
        $region45: #{tpu_custom_call.1} parent=43 // pred_check
          %p270 = pneg %p86
        $region46: #{tpu_custom_call.1} parent=43 // pred_check_branch
          %272 = sbr.rel (%p270) target = $region48
        $region47: #{tpu_custom_call.1} parent=43 // pred_region
          %273 = dma.done %s266, 64
        $region48: #{tpu_custom_call.1} parent=43 // pred_fallthru
          _
        %p274 = scmp.lt.s32.totalorder %s27, 1
        %s275 = scalar_select %p274, %s27, 1
        %p276 = scmp.lt.s32.totalorder %s28, 0
        %s277 = scalar_select %p276, %s28, 0
        %s278 = sadd.s32 %s277, %s275
        %s279 = smul.addr %s278, 4
        %s280 = scalar_lea.vmem %s0, %s279
        %p281 = pneg %p58
        %p282 = pneg %p55
        %s283 = sand.u32 %s73, 1
        %s284 = scalar_lea.sflag [#allocation3], %s283
        %s285 = sand.u32 %s73, 1
        %s286 = smul.addr %s285, 4
        %s287 = scalar_lea.vmem [#allocation2], %s286
        %p288 = pneg %p86
        %p289 = pneg %p83
        %p290 = pneg %p107
        %p291 = pneg %p104
        %p292 = pneg %p128
        %p293 = pneg %p125
        %p294 = pneg %p149
        %p295 = pneg %p146
        %p296 = pneg %p170
        %p297 = pneg %p167
        %p298 = pneg %p198
        %p299 = pneg %p195
        %s300 = sand.u32 %s185, 1
        %s301 = scalar_lea.sflag [#allocation4], %s300
        %s302 = sand.u32 %s185, 1
        %s303 = smul.addr %s302, 4
        %s304 = scalar_lea.vmem [#allocation5], %s303
        %p305 = scmp.lt.s32.totalorder %s27, 1
        %s306 = scalar_select %p305, %s27, 1
        %p307 = scmp.lt.s32.totalorder %s28, 0
        %s308 = scalar_select %p307, %s28, 0
        %s309 = sadd.s32 %s308, %s306
        %s310 = smul.addr %s309, 4
        %s311 = scalar_lea.vmem %s0, %s310
        %s312 = smul.u32 %s28, 16
        %s313 = ssub.s32 %s312, 3
        %v314 = vlaneseq
        %v315 = vand.u32 %v314, 127
        %v316 = vstv %s313
        %v317 = vadd.s32 %v316, %v315
        %vm318 = vcmp.ge.s32.totalorder %v317, 0
        %vm319 = vcmp.lt.s32.totalorder %v317, 16
        %vm320 = vmand %vm318, %vm319
        %v321 = vld [vmem:[%s2] sm:$0xf]
        %v322 = vld [vmem:[%s4] sm:$0xf]
        %v323 = vld [vmem:[%s3] sm:$0xf]
        %v324 = vld [vmem:[%s5] sm:$0xf]
        %v325 = vld [vmem:[%s311] sm:$0xf]
        %v326 = vld [vmem:[%s269] sm:$0xf]
        %328 = vrot.lane.b32.xlu0 %v326, 4
        %v329 = vpop.permute.xlu0 %328
        %332 = vrot.lane.b32.xlu0 %v325, 16
        %v333 = vpop.permute.xlu0 %332
        %vm335 = vcmask 31744
        %v336 = vsel %vm335, %v325, %v329
        %vm337 = vcmask 162816
        %v338 = vsel %vm337, %v336, %v333
        %vm339 = vcmp.gt.f32.partialorder %v338, 0.0
        %v340 = vmul.f32 %v338, 0.1
        %v341 = vsel %vm339, %v338, %v340
        %v343 = vrot.slane %v341, 4
        %344 = vrot.lane.b32.xlu0 %v343, 127
        %v345 = vpop.permute.xlu0 %344
        %347 = vrot.lane.b32.xlu0 %v341, 126
        %v348 = vpop.permute.xlu0 %347
        %vm349 = vcmask 1043456
        %v350 = vsel %vm349, %v341, %v345
        %352 = vset.pattern.permute.xlu0 0
        %353 = vperm.xlu0 %352, %v323
        %v354 = vpop.permute.xlu0 %353
        %vm356 = vcmask 97280
        %v358 = vsel %vm356, %v321, 0
        %v360 = vsel %vm349, %v348, 0
        %362 = vmatprep.subr.mxu0 0.0
        %363 = vmatpush1.msra.mxu0 0.0
        %364 = vmatprep.subr.mxu0 0.0
        %365 = vmatpush1.msra.mxu0 0.0
        %366 = vmatprep.subr.mxu0 0.0
        %367 = vmatpush1.msra.mxu0 0.0
        %368 = vmatprep.subr.mxu0 0.0
        %369 = vmatpush1.msra.mxu0 0.0
        %370 = vmatprep.subr.mxu0 0.0
        %371 = vmatpush1.msra.mxu0 0.0
        %372 = vmatprep.subr.mxu0 0.0
        %373 = vmatpush1.msra.mxu0 0.0
        %374 = vmatprep.subr.mxu0 0.0
        %375 = vmatpush1.msra.mxu0 0.0
        %376 = vmatprep.subr.mxu0 0.0
        %377 = vmatpush1.msra.mxu0 0.0
        %378 = vmatprep.subr.mxu0 0.0
        %379 = vmatpush1.msra.mxu0 0.0
        %380 = vmatprep.subr.mxu0 0.0
        %381 = vmatpush1.msra.mxu0 0.0
        %382 = vmatprep.subr.mxu0 0.0
        %383 = vmatpush1.msra.mxu0 0.0
        %384 = vmatprep.subr.mxu0 0.0
        %385 = vmatpush1.msra.mxu0 0.0
        %386 = vmatprep.subr.mxu0 0.0
        %387 = vmatpush1.msra.mxu0 0.0
        %388 = vmatprep.subr.mxu0 0.0
        %389 = vmatpush1.msra.mxu0 0.0
        %390 = vmatprep.subr.mxu0 0.0
        %391 = vmatpush1.msra.mxu0 %v360
        %392 = vmatprep.subr.mxu0 0.0
        %393 = vmatpush1.msra.mxu0 %v350
        %394 = vmatprep.subr.mxu0 0.0
        %395 = vmatpush2.msra.mxu0 0.0
        %396 = vmatprep.subr.mxu0 0.0
        %397 = vmatpush2.msra.mxu0 0.0
        %398 = vmatprep.subr.mxu0 0.0
        %399 = vmatpush2.msra.mxu0 0.0
        %400 = vmatprep.subr.mxu0 0.0
        %401 = vmatpush2.msra.mxu0 0.0
        %402 = vmatprep.subr.mxu0 0.0
        %403 = vmatpush2.msra.mxu0 0.0
        %404 = vmatprep.subr.mxu0 0.0
        %405 = vmatpush2.msra.mxu0 0.0
        %406 = vmatprep.subr.mxu0 0.0
        %407 = vmatpush2.msra.mxu0 0.0
        %408 = vmatprep.subr.mxu0 0.0
        %409 = vmatpush2.msra.mxu0 0.0
        %410 = vmatprep.subr.mxu0 0.0
        %411 = vmatpush2.msra.mxu0 0.0
        %412 = vmatprep.subr.mxu0 0.0
        %413 = vmatpush2.msra.mxu0 0.0
        %414 = vmatprep.subr.mxu0 0.0
        %415 = vmatpush2.msra.mxu0 0.0
        %416 = vmatprep.subr.mxu0 0.0
        %417 = vmatpush2.msra.mxu0 0.0
        %418 = vmatprep.subr.mxu0 0.0
        %419 = vmatpush2.msra.mxu0 0.0
        %420 = vmatprep.subr.mxu0 0.0
        %421 = vmatpush2.msra.mxu0 0.0
        %422 = vmatprep.subr.mxu0 0.0
        %423 = vmatpush2.msra.mxu0 0.0
        %424 = vmatprep.subr.mxu0 0.0
        %425 = vmatpush2.msra.mxu0 0.0
        %426 = vmatprep.mubr.f32.mxu0 0.0
        %427 = vmatmul.mubr.f32.gmra.mxu0 %v358
        %v428 = vpop.f32.mrf.mxu0
        %v429 = vadd.f32 %v354, %v428
        %v430 = vpop.f32.mrf.mxu0
        %431 = vdwg.mxu0
        %433 = vrot.lane.b32.xlu0 %v338, 127
        %v434 = vpop.permute.xlu0 %433
        %v436 = vadd.f32 %v429, %v434
        %v437 = vsel %vm320, 1, 0
        %vm438 = vcmp.eq.s32.totalorder %v437, 1
        %v439 = vsel %vm438, %v436, 0.0
        %vm440 = vcmp.gt.f32.partialorder %v439, 0.0
        %v441 = vmul.f32 %v439, 0.1
        %v442 = vsel %vm440, %v439, %v441
        %v444 = vrot.slane %v442, 4
        %445 = vrot.lane.b32.xlu0 %v444, 125
        %v446 = vpop.permute.xlu0 %445
        %448 = vrot.lane.b32.xlu0 %v442, 122
        %v449 = vpop.permute.xlu0 %448
        %v450 = vsel %vm349, %v442, %v446
        %452 = vset.pattern.permute.xlu0 0
        %453 = vperm.xlu0 %452, %v324
        %v454 = vpop.permute.xlu0 %453
        %v457 = vsel %vm356, %v322, 0
        %v459 = vsel %vm349, %v449, 0
        %461 = vmatprep.subr.mxu0 0.0
        %462 = vmatpush1.msra.mxu0 0.0
        %463 = vmatprep.subr.mxu0 0.0
        %464 = vmatpush1.msra.mxu0 0.0
        %465 = vmatprep.subr.mxu0 0.0
        %466 = vmatpush1.msra.mxu0 0.0
        %467 = vmatprep.subr.mxu0 0.0
        %468 = vmatpush1.msra.mxu0 0.0
        %469 = vmatprep.subr.mxu0 0.0
        %470 = vmatpush1.msra.mxu0 0.0
        %471 = vmatprep.subr.mxu0 0.0
        %472 = vmatpush1.msra.mxu0 0.0
        %473 = vmatprep.subr.mxu0 0.0
        %474 = vmatpush1.msra.mxu0 0.0
        %475 = vmatprep.subr.mxu0 0.0
        %476 = vmatpush1.msra.mxu0 0.0
        %477 = vmatprep.subr.mxu0 0.0
        %478 = vmatpush1.msra.mxu0 0.0
        %479 = vmatprep.subr.mxu0 0.0
        %480 = vmatpush1.msra.mxu0 0.0
        %481 = vmatprep.subr.mxu0 0.0
        %482 = vmatpush1.msra.mxu0 0.0
        %483 = vmatprep.subr.mxu0 0.0
        %484 = vmatpush1.msra.mxu0 0.0
        %485 = vmatprep.subr.mxu0 0.0
        %486 = vmatpush1.msra.mxu0 0.0
        %487 = vmatprep.subr.mxu0 0.0
        %488 = vmatpush1.msra.mxu0 0.0
        %489 = vmatprep.subr.mxu0 0.0
        %490 = vmatpush1.msra.mxu0 %v459
        %491 = vmatprep.subr.mxu0 0.0
        %492 = vmatpush1.msra.mxu0 %v450
        %493 = vmatprep.subr.mxu0 0.0
        %494 = vmatpush2.msra.mxu0 0.0
        %495 = vmatprep.subr.mxu0 0.0
        %496 = vmatpush2.msra.mxu0 0.0
        %497 = vmatprep.subr.mxu0 0.0
        %498 = vmatpush2.msra.mxu0 0.0
        %499 = vmatprep.subr.mxu0 0.0
        %500 = vmatpush2.msra.mxu0 0.0
        %501 = vmatprep.subr.mxu0 0.0
        %502 = vmatpush2.msra.mxu0 0.0
        %503 = vmatprep.subr.mxu0 0.0
        %504 = vmatpush2.msra.mxu0 0.0
        %505 = vmatprep.subr.mxu0 0.0
        %506 = vmatpush2.msra.mxu0 0.0
        %507 = vmatprep.subr.mxu0 0.0
        %508 = vmatpush2.msra.mxu0 0.0
        %509 = vmatprep.subr.mxu0 0.0
        %510 = vmatpush2.msra.mxu0 0.0
        %511 = vmatprep.subr.mxu0 0.0
        %512 = vmatpush2.msra.mxu0 0.0
        %513 = vmatprep.subr.mxu0 0.0
        %514 = vmatpush2.msra.mxu0 0.0
        %515 = vmatprep.subr.mxu0 0.0
        %516 = vmatpush2.msra.mxu0 0.0
        %517 = vmatprep.subr.mxu0 0.0
        %518 = vmatpush2.msra.mxu0 0.0
        %519 = vmatprep.subr.mxu0 0.0
        %520 = vmatpush2.msra.mxu0 0.0
        %521 = vmatprep.subr.mxu0 0.0
        %522 = vmatpush2.msra.mxu0 0.0
        %523 = vmatprep.subr.mxu0 0.0
        %524 = vmatpush2.msra.mxu0 0.0
        %525 = vmatprep.mubr.f32.mxu0 0.0
        %526 = vmatmul.mubr.f32.gmra.mxu0 %v457
        %v527 = vpop.f32.mrf.mxu0
        %v528 = vadd.f32 %v454, %v527
        %v529 = vpop.f32.mrf.mxu0
        %530 = vdwg.mxu0
        %532 = vrot.lane.b32.xlu0 %v439, 125
        %v533 = vpop.permute.xlu0 %532
        %v535 = vadd.f32 %v528, %v533
        %vm536 = vcmask 125952
        %537 = vst.msk [vmem:[%s304] sm:$0xf] %vm536, %v535
        %s538 = sand.u32 %s185, 1
        %s539 = scalar_lea.sflag [#allocation4], %s538
        %s540 = sand.u32 %s185, 1
        %s541 = smul.addr %s540, 4
        %s542 = scalar_lea.vmem [#allocation5], %s541
        // Predicated region
        $region49: #{tpu_custom_call.1} parent=43 // pred_check
          %p543 = pneg %p195
        $region50: #{tpu_custom_call.1} parent=43 // pred_check_branch
          %545 = sbr.rel (%p543) target = $region52
        $region51: #{tpu_custom_call.1} parent=43 // pred_region
          %s547 = ssub.s32 64, 64
          %548 = vsyncadd %s539, %s547
          %s549 = sadd.s32 %s28, %s27
          %s550 = smul.addr %s549, 64
          %s551 = scalar_lea.hbm %s6, %s550
          %s553 = sshll.u32 %s542, 4
          %s554 = int_to_ptr.vmem [resolvable:$true] %s553
          %556 = dma.vmem_to_hbm [thread:$0]  %s554, 64, %s551, %s539
        $region52: #{tpu_custom_call.1} parent=43 // pred_fallthru
          _
      $region44: #{tpu_custom_call.1} parent=5 // pred_fallthru
        _
      %p557 = scmp.le.s32.totalorder 2, %s18
      // Predicated region
      $region53: #{tpu_custom_call.1} parent=5 // pred_check
        %p558 = pneg %p557
      $region54: #{tpu_custom_call.1} parent=5 // pred_check_branch
        %560 = sbr.rel (%p558) target = $region56
      $region55: #{tpu_custom_call.1} parent=5 // pred_region
        %s561 = ssub.s32 %s18, 2
        // Predicated region
        $region57: #{tpu_custom_call.1} parent=55 // pred_check
          %p562 = pneg %p201
        $region58: #{tpu_custom_call.1} parent=55 // pred_check_branch
          %564 = sbr.rel (%p562) target = $region60
        $region59: #{tpu_custom_call.1} parent=55 // pred_region
          %s565 = sand.u32 %s186, 1
          %s566 = scalar_lea.sflag [#allocation4], %s565
          %s567 = sand.u32 %s186, 1
          %s568 = smul.addr %s567, 4
          %s569 = scalar_lea.vmem [#allocation5], %s568
          %570 = dma.done %s566, 64
        $region60: #{tpu_custom_call.1} parent=55 // pred_fallthru
          _
      $region56: #{tpu_custom_call.1} parent=5 // pred_fallthru
        _
    $region6: #{tpu_custom_call.1} parent=1 // loop_footer
      %s22 = sadd.s32 1, %s18
    $region7: #{tpu_custom_call.1} parent=1 // loop_footer_branch
      %17 = sbr.rel target = $region3
    $region8: #{tpu_custom_call.1} parent=1 // loop_exit
      _
    %571 = vsyncpa [#allocation3], 1
    %s572 = scalar_lea.sflag [#allocation3], 1
    %573 = vsyncpa %s572, 1
    %574 = vsyncpa [#allocation4], 1
    %s575 = scalar_lea.sflag [#allocation4], 1
    %576 = vsyncpa %s575, 1

</llo_original>
